<compile_context>
chip_gen: v6e
topology: v6e:2x2x1
jax: 0.10.0
libtpu: 0.0.40
codegen_flags: <defaults>
</compile_context>

<pallas_src>
import functools

import jax
import jax.numpy as jnp
import numpy as np
from jax.experimental import pallas as pl
from jax.experimental.pallas import tpu as pltpu


# ---------------------------------------------------------------------------
# Kernel: streaming avg/max pool over HW + epilogue
#   (fc2(relu(fc1(.))) -> dynamic linear per head -> sigmoid)
# ---------------------------------------------------------------------------
def _channel_attn_kernel(x_ref, uAw_ref, uAb_ref, uMw_ref, uMb_ref,
                         w1_ref, w2_ref, vAt_ref, vMt_ref,
                         o_ref, sum_sc, max_sc, *, hw_total):
    _, C, hw_chunk = x_ref.shape
    c_idx = pl.program_id(1)
    last = pl.num_programs(1) - 1

    # -- init accumulators at the first HW chunk of this batch element --------
    @pl.when(c_idx == 0)
    def _init():
        sum_sc[...] = jnp.zeros_like(sum_sc)
        max_sc[...] = jnp.full_like(max_sc, -jnp.inf)

    # -- streaming pooling over the HW (lane) axis, f32 accumulation ----------
    x = x_ref[0].astype(jnp.float32)                     # (C, hw_chunk)
    if hw_total % hw_chunk != 0:
        # mask out the padded tail of the last (partial) chunk
        valid = hw_total - c_idx * hw_chunk
        lane = jax.lax.broadcasted_iota(jnp.int32, (C, hw_chunk), 1)
        in_range = lane < valid
        x_sum = jnp.where(in_range, x, 0.0)
        x_max = jnp.where(in_range, x, -jnp.inf)
    else:
        x_sum = x
        x_max = x

    sum_sc[...] += jnp.sum(x_sum, axis=-1, keepdims=True)            # (C, 1)
    max_sc[...] = jnp.maximum(max_sc[...],
                              jnp.max(x_max, axis=-1, keepdims=True))  # (C, 1)

    # -- epilogue: tiny matmuls, only once per batch element ------------------
    @pl.when(c_idx == last)
    def _finalize():
        pooled_avg = sum_sc[...] * (1.0 / hw_total)                  # (C, 1)
        pooled_max = max_sc[...]                                     # (C, 1)
        # batch avg/max through the shared SE MLP with M=2 (column oriented)
        p2 = jnp.concatenate([pooled_avg, pooled_max], axis=1)       # (C, 2)
        h = jnp.maximum(
            jnp.dot(w1_ref[...], p2, preferred_element_type=jnp.float32), 0.0)
        s2 = jnp.dot(w2_ref[...], h, preferred_element_type=jnp.float32)  # (C, 2)
        s_avg = s2[:, 0:1]                                           # (C, 1)
        s_max = s2[:, 1:2]                                           # (C, 1)

        # dynamic linear, reassociated:  out = Vt @ (Uw_t @ s + Ub_t)
        tA = jnp.dot(uAw_ref[0], s_avg,
                     preferred_element_type=jnp.float32) + uAb_ref[0]   # (k, 1)
        tM = jnp.dot(uMw_ref[0], s_max,
                     preferred_element_type=jnp.float32) + uMb_ref[0]   # (k, 1)
        out = (jnp.dot(vAt_ref[...], tA, preferred_element_type=jnp.float32)
               + jnp.dot(vMt_ref[...], tM, preferred_element_type=jnp.float32))
        o_ref[0] = jax.nn.sigmoid(out).astype(o_ref.dtype)          # (C, 1)


def _choose_hw_chunk(hw_total, C, itemsize, target_bytes=2 * 1024 * 1024):
    """Lane-axis chunk: multiple of 128, bounded so double-buffered blocks stay
    well inside the default scoped-VMEM limit on v5e/v6e/v7x."""
    max_lanes = max(128, (target_bytes // max(C * itemsize, 1)) // 128 * 128)
    return hw_total if hw_total <= max_lanes else int(max_lanes)


# ---------------------------------------------------------------------------
# Wrapper
# ---------------------------------------------------------------------------
def channel_attention(x_nchw, text_feat, params, *, hw_chunk=None):
    B, C, H, W = x_nchw.shape
    HW = H * W
    k = params["v_avg"].shape[0]
    Cr = params["w1t"].shape[1]
    D = (C + 1) * k

    # (B,C,H,W) -> (B,C,HW): free reshape of NCHW, no data movement.
    x_chw = x_nchw.reshape(B, C, HW)

    # ParamDecoder linears of both heads as ONE small batched GEMM in XLA.
    wdec = jnp.concatenate([params["wdec_avg"], params["wdec_max"]], axis=1)
    bdec = jnp.concatenate([params["bdec_avg"], params["bdec_max"]], axis=1)
    dec = jnp.dot(text_feat, wdec, preferred_element_type=jnp.float32) + bdec
    U_avg = dec[:, :D].reshape(B, C + 1, k)
    U_max = dec[:, D:].reshape(B, C + 1, k)

    # Tiny parameter transposes (one-time, XLA) so the kernel is fully
    # column-oriented and never transposes anything in VMEM.
    uAw = jnp.transpose(U_avg[:, :C, :], (0, 2, 1))      # (B, k, C)
    uAb = jnp.transpose(U_avg[:, C:, :], (0, 2, 1))      # (B, k, 1)
    uMw = jnp.transpose(U_max[:, :C, :], (0, 2, 1))
    uMb = jnp.transpose(U_max[:, C:, :], (0, 2, 1))
    w1 = params["w1t"].T                                 # (Cr, C)   fc1 weight
    w2 = params["w2t"].T                                 # (C, Cr)   fc2 weight
    vAt = params["v_avg"].T                              # (C, k)
    vMt = params["v_max"].T                              # (C, k)

    if hw_chunk is None:
        hw_chunk = _choose_hw_chunk(HW, C, x_nchw.dtype.itemsize)
    n_chunks = pl.cdiv(HW, hw_chunk)

    full2d = lambda shape: pl.BlockSpec(shape, lambda b, c: (0, 0))
    per_b = lambda shape: pl.BlockSpec(shape, lambda b, c: (b, 0, 0))

    out = pl.pallas_call(
        functools.partial(_channel_attn_kernel, hw_total=HW),
        out_shape=jax.ShapeDtypeStruct((B, C, 1), x_nchw.dtype),
        grid=(B, n_chunks),
        in_specs=[pl.BlockSpec((1, C, hw_chunk), lambda b, c: (b, 0, c)),
                  per_b((1, k, C)), per_b((1, k, 1)),
                  per_b((1, k, C)), per_b((1, k, 1)),
                  full2d((Cr, C)), full2d((C, Cr)),
                  full2d((C, k)), full2d((C, k))],
        out_specs=pl.BlockSpec((1, C, 1), lambda b, c: (b, 0, 0)),
        scratch_shapes=[pltpu.VMEM((C, 1), jnp.float32),   # running sum
                        pltpu.VMEM((C, 1), jnp.float32)],  # running max
        compiler_params=pltpu.CompilerParams(
            dimension_semantics=("parallel", "arbitrary")),
    )(x_chw, uAw, uAb, uMw, uMb, w1, w2, vAt, vMt)

    return out.reshape(B, C, 1, 1)


# ---------------------------------------------------------------------------
# Pure-JAX reference (mirrors the PyTorch forward exactly)
# ---------------------------------------------------------------------------
def reference(x_nchw, text_feat, params):
    B, C, H, W = x_nchw.shape
    k = params["v_avg"].shape[0]
    xf = x_nchw.reshape(B, C, H * W)
    pooled_avg = xf.mean(-1)
    pooled_max = xf.max(-1)

    def se(s):
        return jnp.maximum(s @ params["w1t"], 0.0) @ params["w2t"]

    def dyn(s, wd, bd, V):
        dec = text_feat @ wd + bd                      # (B, (C+1)*k)
        U = dec.reshape(B, C + 1, k)
        p = jnp.einsum("bik,kj->bij", U, V)            # (B, C+1, C)
        w = p[:, :C, :]
        b = p[:, C, :]
        return jnp.einsum("bd,bde->be", s, w) + b

    out = jax.nn.sigmoid(
        dyn(se(pooled_avg), params["wdec_avg"], params["bdec_avg"], params["v_avg"])
        + dyn(se(pooled_max), params["wdec_max"], params["bdec_max"], params["v_max"]))
    return out.reshape(B, C, 1, 1)


# ---------------------------------------------------------------------------
if __name__ == "__main__":
    C = 32                               # in_planes = 32 -> fc1 has C//16 = 2 channels
    Cr = C // 16
    mu_dim, k = 64, 8                    # small text_dim / k for the synthetic test

    key = jax.random.PRNGKey(0)
    ks = jax.random.split(key, 12)

    # Deterministic synthetic parameters (shapes follow the module's __init__).
    # Note: torch initializes ParamDecoder.V to zeros; we use small random
    # values so the test exercises the full dynamic-linear path.
    params = {
        "w1t": jax.random.normal(ks[0], (C, Cr), jnp.float32) / np.sqrt(C),
        "w2t": jax.random.normal(ks[1], (Cr, C), jnp.float32) / np.sqrt(Cr),
        "wdec_avg": jax.random.normal(ks[2], (mu_dim, (C + 1) * k), jnp.float32) / np.sqrt(mu_dim),
        "bdec_avg": jax.random.normal(ks[3], (1, (C + 1) * k), jnp.float32) * 0.01,
        "v_avg": jax.random.normal(ks[4], (k, C), jnp.float32) / np.sqrt(k),
        "wdec_max": jax.random.normal(ks[5], (mu_dim, (C + 1) * k), jnp.float32) / np.sqrt(mu_dim),
        "bdec_max": jax.random.normal(ks[6], (1, (C + 1) * k), jnp.float32) * 0.01,
        "v_max": jax.random.normal(ks[7], (k, C), jnp.float32) / np.sqrt(k),
    }

    # config 1: HW divisible by the chunk (2 full chunks -> exercises accumulation)
    # config 2: HW NOT divisible by the chunk (exercises the masked tail chunk)
    configs = [
        dict(B=2, H=16, W=16, hw_chunk=128),
        dict(B=2, H=12, W=12, hw_chunk=128),
    ]

    for idx, cfg in enumerate(configs):
        B, H, W = cfg["B"], cfg["H"], cfg["W"]
        kx, kt = jax.random.split(jax.random.fold_in(ks[10], idx))
        x = jax.random.normal(kx, (B, C, H, W), jnp.float32)
        text_feat = jax.random.normal(kt, (B, mu_dim), jnp.float32)

        out = channel_attention(x, text_feat, params, hw_chunk=cfg["hw_chunk"])
        out = jax.block_until_ready(out)
        ref = jax.block_until_ready(reference(x, text_feat, params))

        assert out.shape == (B, C, 1, 1)
        np.testing.assert_allclose(np.asarray(out), np.asarray(ref),
                                   rtol=2e-3, atol=2e-3)

    print("KERNEL_OK")
</pallas_src>

<mosaic_0001>
module attributes {stable_mosaic.version = 11 : i64} {
  func.func @_channel_attn_kernel(%arg0: i32, %arg1: i32, %arg2: memref<1x32x128xf32, #tpu.memory_space<vmem>>, %arg3: memref<1x8x32xf32, #tpu.memory_space<vmem>>, %arg4: memref<1x8x1xf32, #tpu.memory_space<vmem>>, %arg5: memref<1x8x32xf32, #tpu.memory_space<vmem>>, %arg6: memref<1x8x1xf32, #tpu.memory_space<vmem>>, %arg7: memref<2x32xf32, #tpu.memory_space<vmem>>, %arg8: memref<32x2xf32, #tpu.memory_space<vmem>>, %arg9: memref<32x8xf32, #tpu.memory_space<vmem>>, %arg10: memref<32x8xf32, #tpu.memory_space<vmem>>, %arg11: memref<1x32x1xf32, #tpu.memory_space<vmem>>, %arg12: memref<32x1xf32, #tpu.memory_space<vmem>>, %arg13: memref<32x1xf32, #tpu.memory_space<vmem>>) attributes {dimension_semantics = [#tpu.dimension_semantics<parallel>, #tpu.dimension_semantics<arbitrary>], iteration_bounds = array<i64: 2, 2>, scalar_prefetch = 0 : i64, scratch_operands = 2 : i64, tpu.core_type = #tpu.core_type<tc>, window_params = [{transform_indices = @transform_0, window_bounds = array<i64: 1, 32, 128>}, {transform_indices = @transform_1, window_bounds = array<i64: 1, 8, 32>}, {transform_indices = @transform_2, window_bounds = array<i64: 1, 8, 1>}, {transform_indices = @transform_3, window_bounds = array<i64: 1, 8, 32>}, {transform_indices = @transform_4, window_bounds = array<i64: 1, 8, 1>}, {pipeline_mode = #tpu.pipeline_mode<synchronous>, transform_indices = @transform_5, window_bounds = array<i64: 2, 32>}, {pipeline_mode = #tpu.pipeline_mode<synchronous>, transform_indices = @transform_6, window_bounds = array<i64: 32, 2>}, {pipeline_mode = #tpu.pipeline_mode<synchronous>, transform_indices = @transform_7, window_bounds = array<i64: 32, 8>}, {pipeline_mode = #tpu.pipeline_mode<synchronous>, transform_indices = @transform_8, window_bounds = array<i64: 32, 8>}, {transform_indices = @transform_9, window_bounds = array<i64: 1, 32, 1>}]} {
    %c0_i32 = arith.constant 0 : i32
    %0 = arith.cmpi eq, %arg1, %c0_i32 : i32
    %1 = arith.extui %0 : i1 to i32
    %c0_i32_0 = arith.constant 0 : i32
    %2 = arith.cmpi ne, %1, %c0_i32_0 : i32
    scf.if %2 {
      %cst_13 = arith.constant 0.000000e+00 : f32
      %18 = vector.broadcast %cst_13 : f32 to vector<32x1xf32>
      %c0_14 = arith.constant 0 : index
      %c0_15 = arith.constant 0 : index
      %19 = vector.load %arg12[%c0_14, %c0_15] : memref<32x1xf32, #tpu.memory_space<vmem>>, vector<32x1xf32>
      tpu.vector_store %arg12[%c0_14, %c0_15], %18 {strides = array<i32>} : memref<32x1xf32, #tpu.memory_space<vmem>>, vector<32x1xf32>,
      %cst_16 = arith.constant 0xFF800000 : f32
      %20 = vector.broadcast %cst_16 : f32 to vector<32x1xf32>
      %c0_17 = arith.constant 0 : index
      %c0_18 = arith.constant 0 : index
      %21 = vector.load %arg13[%c0_17, %c0_18] : memref<32x1xf32, #tpu.memory_space<vmem>>, vector<32x1xf32>
      tpu.vector_store %arg13[%c0_17, %c0_18], %20 {strides = array<i32>} : memref<32x1xf32, #tpu.memory_space<vmem>>, vector<32x1xf32>,
    } else {
    }
    %c0 = arith.constant 0 : index
    %c0_1 = arith.constant 0 : index
    %c0_2 = arith.constant 0 : index
    %3 = vector.load %arg2[%c0, %c0_1, %c0_2] : memref<1x32x128xf32, #tpu.memory_space<vmem>>, vector<1x32x128xf32>
    %4 = vector.shape_cast %3 : vector<1x32x128xf32> to vector<32x128xf32>
    %c0_3 = arith.constant 0 : index
    %c0_4 = arith.constant 0 : index
    %5 = vector.load %arg12[%c0_3, %c0_4] : memref<32x1xf32, #tpu.memory_space<vmem>>, vector<32x1xf32>
    %cst = arith.constant dense<0.000000e+00> : vector<32xf32>
    %6 = vector.multi_reduction <add>, %4, %cst [1] : vector<32x128xf32> to vector<32xf32>
    %7 = vector.shape_cast %6 : vector<32xf32> to vector<32x1xf32>
    %8 = arith.addf %5, %7 : vector<32x1xf32>
    %c0_5 = arith.constant 0 : index
    %c0_6 = arith.constant 0 : index
    %9 = vector.load %arg12[%c0_5, %c0_6] : memref<32x1xf32, #tpu.memory_space<vmem>>, vector<32x1xf32>
    tpu.vector_store %arg12[%c0_5, %c0_6], %8 {strides = array<i32>} : memref<32x1xf32, #tpu.memory_space<vmem>>, vector<32x1xf32>,
    %c0_7 = arith.constant 0 : index
    %c0_8 = arith.constant 0 : index
    %10 = vector.load %arg13[%c0_7, %c0_8] : memref<32x1xf32, #tpu.memory_space<vmem>>, vector<32x1xf32>
    %cst_9 = arith.constant dense<0xFF800000> : vector<32xf32>
    %11 = vector.multi_reduction <maximumf>, %4, %cst_9 [1] : vector<32x128xf32> to vector<32xf32>
    %12 = vector.shape_cast %11 : vector<32xf32> to vector<32x1xf32>
    %13 = arith.maximumf %10, %12 : vector<32x1xf32>
    %c0_10 = arith.constant 0 : index
    %c0_11 = arith.constant 0 : index
    %14 = vector.load %arg13[%c0_10, %c0_11] : memref<32x1xf32, #tpu.memory_space<vmem>>, vector<32x1xf32>
    tpu.vector_store %arg13[%c0_10, %c0_11], %13 {strides = array<i32>} : memref<32x1xf32, #tpu.memory_space<vmem>>, vector<32x1xf32>,
    %c1_i32 = arith.constant 1 : i32
    %15 = arith.cmpi eq, %arg1, %c1_i32 : i32
    %16 = arith.extui %15 : i1 to i32
    %c0_i32_12 = arith.constant 0 : i32
    %17 = arith.cmpi ne, %16, %c0_i32_12 : i32
    scf.if %17 {
      %c0_13 = arith.constant 0 : index
      %c0_14 = arith.constant 0 : index
      %18 = vector.load %arg12[%c0_13, %c0_14] : memref<32x1xf32, #tpu.memory_space<vmem>>, vector<32x1xf32>
      %cst_15 = arith.constant 3.906250e-03 : f32
      %19 = vector.broadcast %cst_15 : f32 to vector<32x1xf32>
      %20 = arith.mulf %18, %19 : vector<32x1xf32>
      %c0_16 = arith.constant 0 : index
      %c0_17 = arith.constant 0 : index
      %21 = vector.load %arg13[%c0_16, %c0_17] : memref<32x1xf32, #tpu.memory_space<vmem>>, vector<32x1xf32>
      %22 = tpu.concatenate %20, %21 in 1 : vector<32x1xf32>, vector<32x1xf32> -> vector<32x2xf32>
      %c0_18 = arith.constant 0 : index
      %c0_19 = arith.constant 0 : index
      %23 = vector.load %arg7[%c0_18, %c0_19] : memref<2x32xf32, #tpu.memory_space<vmem>>, vector<2x32xf32>
      %cst_20 = arith.constant dense<0.000000e+00> : vector<2x2xf32>
      %24 = tpu.matmul %23, %22, %cst_20 {dimension_numbers = #tpu.dot_dimension_numbers<[1], [0], [0], [1], [0, 0, 1, 1], [], []>} : vector<2x32xf32>, vector<32x2xf32>, vector<2x2xf32> -> vector<2x2xf32>
      %cst_21 = arith.constant 0.000000e+00 : f32
      %25 = vector.broadcast %cst_21 : f32 to vector<2x2xf32>
      %26 = arith.maximumf %24, %25 : vector<2x2xf32>
      %c0_22 = arith.constant 0 : index
      %c0_23 = arith.constant 0 : index
      %27 = vector.load %arg8[%c0_22, %c0_23] : memref<32x2xf32, #tpu.memory_space<vmem>>, vector<32x2xf32>
      %cst_24 = arith.constant dense<0.000000e+00> : vector<32x2xf32>
      %28 = tpu.matmul %27, %26, %cst_24 {dimension_numbers = #tpu.dot_dimension_numbers<[1], [0], [0], [1], [0, 0, 1, 1], [], []>} : vector<32x2xf32>, vector<2x2xf32>, vector<32x2xf32> -> vector<32x2xf32>
      %29 = vector.extract_strided_slice %28 {offsets = [0, 0], sizes = [32, 1], strides = [1, 1]} : vector<32x2xf32> to vector<32x1xf32>
      %30 = vector.extract_strided_slice %28 {offsets = [0, 1], sizes = [32, 1], strides = [1, 1]} : vector<32x2xf32> to vector<32x1xf32>
      %c0_25 = arith.constant 0 : index
      %c0_26 = arith.constant 0 : index
      %c0_27 = arith.constant 0 : index
      %31 = vector.load %arg3[%c0_25, %c0_26, %c0_27] : memref<1x8x32xf32, #tpu.memory_space<vmem>>, vector<1x8x32xf32>
      %32 = vector.shape_cast %31 : vector<1x8x32xf32> to vector<8x32xf32>
      %cst_28 = arith.constant dense<0.000000e+00> : vector<8x1xf32>
      %33 = tpu.matmul %32, %29, %cst_28 {dimension_numbers = #tpu.dot_dimension_numbers<[1], [0], [0], [1], [0, 0, 1, 1], [], []>} : vector<8x32xf32>, vector<32x1xf32>, vector<8x1xf32> -> vector<8x1xf32>
      %c0_29 = arith.constant 0 : index
      %c0_30 = arith.constant 0 : index
      %c0_31 = arith.constant 0 : index
      %34 = vector.load %arg4[%c0_29, %c0_30, %c0_31] : memref<1x8x1xf32, #tpu.memory_space<vmem>>, vector<1x8x1xf32>
      %35 = vector.shape_cast %34 : vector<1x8x1xf32> to vector<8x1xf32>
      %36 = arith.addf %33, %35 : vector<8x1xf32>
      %c0_32 = arith.constant 0 : index
      %c0_33 = arith.constant 0 : index
      %c0_34 = arith.constant 0 : index
      %37 = vector.load %arg5[%c0_32, %c0_33, %c0_34] : memref<1x8x32xf32, #tpu.memory_space<vmem>>, vector<1x8x32xf32>
      %38 = vector.shape_cast %37 : vector<1x8x32xf32> to vector<8x32xf32>
      %cst_35 = arith.constant dense<0.000000e+00> : vector<8x1xf32>
      %39 = tpu.matmul %38, %30, %cst_35 {dimension_numbers = #tpu.dot_dimension_numbers<[1], [0], [0], [1], [0, 0, 1, 1], [], []>} : vector<8x32xf32>, vector<32x1xf32>, vector<8x1xf32> -> vector<8x1xf32>
      %c0_36 = arith.constant 0 : index
      %c0_37 = arith.constant 0 : index
      %c0_38 = arith.constant 0 : index
      %40 = vector.load %arg6[%c0_36, %c0_37, %c0_38] : memref<1x8x1xf32, #tpu.memory_space<vmem>>, vector<1x8x1xf32>
      %41 = vector.shape_cast %40 : vector<1x8x1xf32> to vector<8x1xf32>
      %42 = arith.addf %39, %41 : vector<8x1xf32>
      %c0_39 = arith.constant 0 : index
      %c0_40 = arith.constant 0 : index
      %43 = vector.load %arg9[%c0_39, %c0_40] : memref<32x8xf32, #tpu.memory_space<vmem>>, vector<32x8xf32>
      %cst_41 = arith.constant dense<0.000000e+00> : vector<32x1xf32>
      %44 = tpu.matmul %43, %36, %cst_41 {dimension_numbers = #tpu.dot_dimension_numbers<[1], [0], [0], [1], [0, 0, 1, 1], [], []>} : vector<32x8xf32>, vector<8x1xf32>, vector<32x1xf32> -> vector<32x1xf32>
      %c0_42 = arith.constant 0 : index
      %c0_43 = arith.constant 0 : index
      %45 = vector.load %arg10[%c0_42, %c0_43] : memref<32x8xf32, #tpu.memory_space<vmem>>, vector<32x8xf32>
      %cst_44 = arith.constant dense<0.000000e+00> : vector<32x1xf32>
      %46 = tpu.matmul %45, %42, %cst_44 {dimension_numbers = #tpu.dot_dimension_numbers<[1], [0], [0], [1], [0, 0, 1, 1], [], []>} : vector<32x8xf32>, vector<8x1xf32>, vector<32x1xf32> -> vector<32x1xf32>
      %47 = arith.addf %44, %46 : vector<32x1xf32>
      %48 = arith.negf %47 : vector<32x1xf32>
      %49 = math.exp %48 : vector<32x1xf32>
      %cst_45 = arith.constant 1.000000e+00 : f32
      %50 = vector.broadcast %cst_45 : f32 to vector<32x1xf32>
      %51 = arith.addf %50, %49 : vector<32x1xf32>
      %52 = arith.divf %50, %51 : vector<32x1xf32>
      %c0_46 = arith.constant 0 : index
      %c0_47 = arith.constant 0 : index
      %c0_48 = arith.constant 0 : index
      %53 = vector.load %arg11[%c0_46, %c0_47, %c0_48] : memref<1x32x1xf32, #tpu.memory_space<vmem>>, vector<1x32x1xf32>
      %54 = vector.shape_cast %53 : vector<1x32x1xf32> to vector<32x1xf32>
      %55 = vector.shape_cast %52 : vector<32x1xf32> to vector<1x32x1xf32>
      tpu.vector_store %arg11[%c0_46, %c0_47, %c0_48], %55 {strides = array<i32>} : memref<1x32x1xf32, #tpu.memory_space<vmem>>, vector<1x32x1xf32>,
    } else {
    }
    return
  }
  func.func @transform_0(%arg0: i32, %arg1: i32) -> (i32, i32, i32) {
    %c0_i32 = arith.constant 0 : i32
    %c0_i32_0 = arith.constant 0 : i32
    return %arg0, %c0_i32, %arg1 : i32, i32, i32
  }
  func.func @transform_1(%arg0: i32, %arg1: i32) -> (i32, i32, i32) {
    %c0_i32 = arith.constant 0 : i32
    %c0_i32_0 = arith.constant 0 : i32
    %c0_i32_1 = arith.constant 0 : i32
    return %arg0, %c0_i32, %c0_i32_0 : i32, i32, i32
  }
  func.func @transform_2(%arg0: i32, %arg1: i32) -> (i32, i32, i32) {
    %c0_i32 = arith.constant 0 : i32
    %c0_i32_0 = arith.constant 0 : i32
    %c0_i32_1 = arith.constant 0 : i32
    return %arg0, %c0_i32, %c0_i32_0 : i32, i32, i32
  }
  func.func @transform_3(%arg0: i32, %arg1: i32) -> (i32, i32, i32) {
    %c0_i32 = arith.constant 0 : i32
    %c0_i32_0 = arith.constant 0 : i32
    %c0_i32_1 = arith.constant 0 : i32
    return %arg0, %c0_i32, %c0_i32_0 : i32, i32, i32
  }
  func.func @transform_4(%arg0: i32, %arg1: i32) -> (i32, i32, i32) {
    %c0_i32 = arith.constant 0 : i32
    %c0_i32_0 = arith.constant 0 : i32
    %c0_i32_1 = arith.constant 0 : i32
    return %arg0, %c0_i32, %c0_i32_0 : i32, i32, i32
  }
  func.func @transform_5(%arg0: i32, %arg1: i32) -> (i32, i32) {
    %c0_i32 = arith.constant 0 : i32
    %c0_i32_0 = arith.constant 0 : i32
    %c0_i32_1 = arith.constant 0 : i32
    return %c0_i32, %c0_i32_0 : i32, i32
  }
  func.func @transform_6(%arg0: i32, %arg1: i32) -> (i32, i32) {
    %c0_i32 = arith.constant 0 : i32
    %c0_i32_0 = arith.constant 0 : i32
    %c0_i32_1 = arith.constant 0 : i32
    return %c0_i32, %c0_i32_0 : i32, i32
  }
  func.func @transform_7(%arg0: i32, %arg1: i32) -> (i32, i32) {
    %c0_i32 = arith.constant 0 : i32
    %c0_i32_0 = arith.constant 0 : i32
    %c0_i32_1 = arith.constant 0 : i32
    return %c0_i32, %c0_i32_0 : i32, i32
  }
  func.func @transform_8(%arg0: i32, %arg1: i32) -> (i32, i32) {
    %c0_i32 = arith.constant 0 : i32
    %c0_i32_0 = arith.constant 0 : i32
    %c0_i32_1 = arith.constant 0 : i32
    return %c0_i32, %c0_i32_0 : i32, i32
  }
  func.func @transform_9(%arg0: i32, %arg1: i32) -> (i32, i32, i32) {
    %c0_i32 = arith.constant 0 : i32
    %c0_i32_0 = arith.constant 0 : i32
    %c0_i32_1 = arith.constant 0 : i32
    return %arg0, %c0_i32, %c0_i32_0 : i32, i32, i32
  }
}

</mosaic_0001>

<llo_original>
// kernel: tpu_custom_call.1
$region0: #{tpu_custom_call.1}
  #allocation0 [shape = 'u32[]', space=smem, size = 0x4, offset = 0x4, fixed_abs, tag = 'smem constant byte address 0x4 - core index']
  #allocation1 [shape = 'u32[144,128]{1,0:T(1,128)}', space=vmem, size = 0x12000, scoped, tag = 'internal scratch']
  #allocation2 [shape = 'f32[32,1]{1,0:T(8,128)}', space=vmem, size = 0x4000, scoped, tag = 'scratch operand']
  #allocation3 [shape = 'f32[32,1]{1,0:T(8,128)}', space=vmem, size = 0x4000, scoped, tag = 'scratch operand']
  %s0 = inlined_call_operand.vmem [shape: f32[2,32,256], index: 0, kind: input, shape index: {}]
  %s1 = inlined_call_operand.vmem [shape: f32[2,8,32], index: 1, kind: input, shape index: {}]
  %s2 = inlined_call_operand.vmem [shape: f32[2,8,1], index: 2, kind: input, shape index: {}]
  %s3 = inlined_call_operand.hbm [shape: f32[2,8,32], index: 3, kind: input, shape index: {}]
  %s4 = inlined_call_operand.vmem [shape: f32[2,8,1], index: 4, kind: input, shape index: {}]
  %s5 = inlined_call_operand.hbm [shape: f32[2,32], index: 5, kind: input, shape index: {}]
  %s6 = inlined_call_operand.vmem [shape: f32[32,2], index: 6, kind: input, shape index: {}]
  %s7 = inlined_call_operand.vmem [shape: f32[32,8], index: 7, kind: input, shape index: {}]
  %s8 = inlined_call_operand.vmem [shape: f32[32,8], index: 8, kind: input, shape index: {}]
  %s9 = inlined_call_operand.vmem [shape: f32[2,32,1], index: 9, kind: output, shape index: {}]
  %s10 = sld [smem:[#allocation0]]
  $region123: #{tpu_custom_call.1} parent=0
    _
  %s12 = ssub.s32 1, %s10
  %s13 = scalar_select 0, %s12, %s10
  $region1: #{tpu_custom_call.1} parent=0
    #allocation4 [shape = 'u8[32768]{0}', space=vmem, size = 0x8000, scoped, tag = 'input window, operand 0']
    #allocation5 [shape = 'u8[8192]{0}', space=vmem, size = 0x2000, scoped, tag = 'input window, operand 3']
    #allocation6 [shape = 's32[2]{0}', space=sflag, size = 0x8, scoped, tag = 'scoped memory for tpu_custom_call.1']
    #allocation7 [shape = 'u8[1024]{0}', space=vmem, size = 0x400, scoped, tag = 'input window, operand 5, single buffered']
    #allocation8 [shape = 's32[1]{0}', space=sflag, size = 0x4, scoped, tag = 'scoped memory for tpu_custom_call.1']
    %14 = vsyncpa [#allocation6], 0
    %s15 = scalar_lea.sflag [#allocation6], 1
    %16 = vsyncpa %s15, 0
    %17 = vsyncpa [#allocation8], 0
    loop: start=0, step=1, limit=6
    $region2: #{tpu_custom_call.1} parent=1 // loop_pre_header
      _
    $region3: #{tpu_custom_call.1} parent=1 // loop_header
      %s19 = sphi 0, %s23
      %p20 = scmp.ge.s32.totalorder %s19, 6
      %s26 = sphi 0, %s38
      %s27 = sphi 0, %s34
      %s28 = sphi 0, %s26
      %s29 = sphi 0, %s27
      %s30 = sphi 0, %s28
      %s31 = sphi 0, %s29
      %s43 = sphi 0, %s45
      %s46 = sphi 0, %s43
      %s47 = sphi 0, %s46
      %s63 = sphi 0, %s47
      %s69 = sphi 0, %s71
      %s72 = sphi 0, %s69
      %s73 = sphi 0, %s72
      %s89 = sphi 0, %s73
      %s95 = sphi 0, %s97
      %s98 = sphi 0, %s95
      %s99 = sphi 0, %s98
      %s115 = sphi 0, %s99
      %s121 = sphi 0, %s123
      %s124 = sphi 0, %s121
      %s125 = sphi 0, %s124
      %s141 = sphi 0, %s125
      %s147 = sphi 0, %s149
      %s150 = sphi 0, %s147
      %s151 = sphi 0, %s150
      %s167 = sphi 0, %s151
      %s171 = sphi 0, %s171
      %s173 = sphi 0, %s171
      %s174 = sphi 0, %s173
      %s188 = sphi 0, %s174
      %s192 = sphi 0, %s192
      %s194 = sphi 0, %s192
      %s195 = sphi 0, %s194
      %s209 = sphi 0, %s195
      %s213 = sphi 0, %s213
      %s215 = sphi 0, %s213
      %s216 = sphi 0, %s215
      %s230 = sphi 0, %s216
      %s234 = sphi 0, %s234
      %s236 = sphi 0, %s234
      %s237 = sphi 0, %s236
      %s251 = sphi 0, %s237
      %s257 = sphi 0, %s259
      %s260 = sphi 0, %s257
      %s261 = sphi 0, %s260
      %s277 = sphi 0, %s261
    $region4: #{tpu_custom_call.1} parent=1 // loop_header_branch
      %22 = sbr.rel (%p20) target = $region8
    $region5: #{tpu_custom_call.1} parent=1 // loop_body
      %s24 = ssub.s32 %s19, 1
      %s25 = ssub.s32 %s19, 2
      %s32 = sadd.s32 1, %s27
      %p33 = scmp.ge.s32.totalorder %s32, 2
      %s34 = scalar_select %p33, 0, %s32
      %s35 = sadd.s32 1, %s26
      %s36 = scalar_select %p33, %s35, %s26
      %p37 = scmp.ge.s32.totalorder %s36, 2
      %s38 = scalar_select %p37, 0, %s36
      %s39 = ssub.s32 %s26, %s38
      %s40 = ssub.s32 %s27, %s34
      %s41 = sor.u32 %s39, %s40
      %p42 = scmp.eq.s32.totalorder %s41, 0
      %s44 = sadd.s32 %s43, 1
      %s45 = scalar_select %p42, %s43, %s44
      %p48 = pneg %p42
      %p49 = scmp.eq.s32.totalorder %s19, 3
      %p50 = por %p48, %p49
      %p51 = scmp.ne.s32.totalorder %s43, %s46
      %p52 = scmp.eq.s32.totalorder %s19, 0
      %p53 = por %p51, %p52
      %p54 = scmp.ne.s32.totalorder %s43, %s46
      %p55 = scmp.eq.s32.totalorder %s24, 3
      %p56 = por %p54, %p55
      %p57 = scmp.ne.s32.totalorder %s46, %s47
      %p58 = scmp.eq.s32.totalorder %s24, 0
      %p59 = por %p57, %p58
      %p60 = scmp.ne.s32.totalorder %s46, %s47
      %p61 = scmp.eq.s32.totalorder %s25, 3
      %p62 = por %p60, %p61
      %p64 = scmp.ne.s32.totalorder %s47, %s63
      %p65 = scmp.eq.s32.totalorder %s25, 0
      %p66 = por %p64, %p65
      %s67 = ssub.s32 %s26, %s38
      %p68 = scmp.eq.s32.totalorder %s67, 0
      %s70 = sadd.s32 %s69, 1
      %s71 = scalar_select %p68, %s69, %s70
      %p74 = pneg %p68
      %p75 = scmp.eq.s32.totalorder %s19, 3
      %p76 = por %p74, %p75
      %p77 = scmp.ne.s32.totalorder %s69, %s72
      %p78 = scmp.eq.s32.totalorder %s19, 0
      %p79 = por %p77, %p78
      %p80 = scmp.ne.s32.totalorder %s69, %s72
      %p81 = scmp.eq.s32.totalorder %s24, 3
      %p82 = por %p80, %p81
      %p83 = scmp.ne.s32.totalorder %s72, %s73
      %p84 = scmp.eq.s32.totalorder %s24, 0
      %p85 = por %p83, %p84
      %p86 = scmp.ne.s32.totalorder %s72, %s73
      %p87 = scmp.eq.s32.totalorder %s25, 3
      %p88 = por %p86, %p87
      %p90 = scmp.ne.s32.totalorder %s73, %s89
      %p91 = scmp.eq.s32.totalorder %s25, 0
      %p92 = por %p90, %p91
      %s93 = ssub.s32 %s26, %s38
      %p94 = scmp.eq.s32.totalorder %s93, 0
      %s96 = sadd.s32 %s95, 1
      %s97 = scalar_select %p94, %s95, %s96
      %p100 = pneg %p94
      %p101 = scmp.eq.s32.totalorder %s19, 3
      %p102 = por %p100, %p101
      %p103 = scmp.ne.s32.totalorder %s95, %s98
      %p104 = scmp.eq.s32.totalorder %s19, 0
      %p105 = por %p103, %p104
      %p106 = scmp.ne.s32.totalorder %s95, %s98
      %p107 = scmp.eq.s32.totalorder %s24, 3
      %p108 = por %p106, %p107
      %p109 = scmp.ne.s32.totalorder %s98, %s99
      %p110 = scmp.eq.s32.totalorder %s24, 0
      %p111 = por %p109, %p110
      %p112 = scmp.ne.s32.totalorder %s98, %s99
      %p113 = scmp.eq.s32.totalorder %s25, 3
      %p114 = por %p112, %p113
      %p116 = scmp.ne.s32.totalorder %s99, %s115
      %p117 = scmp.eq.s32.totalorder %s25, 0
      %p118 = por %p116, %p117
      %s119 = ssub.s32 %s26, %s38
      %p120 = scmp.eq.s32.totalorder %s119, 0
      %s122 = sadd.s32 %s121, 1
      %s123 = scalar_select %p120, %s121, %s122
      %p126 = pneg %p120
      %p127 = scmp.eq.s32.totalorder %s19, 3
      %p128 = por %p126, %p127
      %p129 = scmp.ne.s32.totalorder %s121, %s124
      %p130 = scmp.eq.s32.totalorder %s19, 0
      %p131 = por %p129, %p130
      %p132 = scmp.ne.s32.totalorder %s121, %s124
      %p133 = scmp.eq.s32.totalorder %s24, 3
      %p134 = por %p132, %p133
      %p135 = scmp.ne.s32.totalorder %s124, %s125
      %p136 = scmp.eq.s32.totalorder %s24, 0
      %p137 = por %p135, %p136
      %p138 = scmp.ne.s32.totalorder %s124, %s125
      %p139 = scmp.eq.s32.totalorder %s25, 3
      %p140 = por %p138, %p139
      %p142 = scmp.ne.s32.totalorder %s125, %s141
      %p143 = scmp.eq.s32.totalorder %s25, 0
      %p144 = por %p142, %p143
      %s145 = ssub.s32 %s26, %s38
      %p146 = scmp.eq.s32.totalorder %s145, 0
      %s148 = sadd.s32 %s147, 1
      %s149 = scalar_select %p146, %s147, %s148
      %p152 = pneg %p146
      %p153 = scmp.eq.s32.totalorder %s19, 3
      %p154 = por %p152, %p153
      %p155 = scmp.ne.s32.totalorder %s147, %s150
      %p156 = scmp.eq.s32.totalorder %s19, 0
      %p157 = por %p155, %p156
      %p158 = scmp.ne.s32.totalorder %s147, %s150
      %p159 = scmp.eq.s32.totalorder %s24, 3
      %p160 = por %p158, %p159
      %p161 = scmp.ne.s32.totalorder %s150, %s151
      %p162 = scmp.eq.s32.totalorder %s24, 0
      %p163 = por %p161, %p162
      %p164 = scmp.ne.s32.totalorder %s150, %s151
      %p165 = scmp.eq.s32.totalorder %s25, 3
      %p166 = por %p164, %p165
      %p168 = scmp.ne.s32.totalorder %s151, %s167
      %p169 = scmp.eq.s32.totalorder %s25, 0
      %p170 = por %p168, %p169
      %s172 = sadd.s32 %s171, 1
      %p175 = scmp.eq.s32.totalorder %s19, 3
      %p176 = scmp.ne.s32.totalorder %s171, %s173
      %p177 = scmp.eq.s32.totalorder %s19, 0
      %p178 = por %p176, %p177
      %p179 = scmp.ne.s32.totalorder %s171, %s173
      %p180 = scmp.eq.s32.totalorder %s24, 3
      %p181 = por %p179, %p180
      %p182 = scmp.ne.s32.totalorder %s173, %s174
      %p183 = scmp.eq.s32.totalorder %s24, 0
      %p184 = por %p182, %p183
      %p185 = scmp.ne.s32.totalorder %s173, %s174
      %p186 = scmp.eq.s32.totalorder %s25, 3
      %p187 = por %p185, %p186
      %p189 = scmp.ne.s32.totalorder %s174, %s188
      %p190 = scmp.eq.s32.totalorder %s25, 0
      %p191 = por %p189, %p190
      %s193 = sadd.s32 %s192, 1
      %p196 = scmp.eq.s32.totalorder %s19, 3
      %p197 = scmp.ne.s32.totalorder %s192, %s194
      %p198 = scmp.eq.s32.totalorder %s19, 0
      %p199 = por %p197, %p198
      %p200 = scmp.ne.s32.totalorder %s192, %s194
      %p201 = scmp.eq.s32.totalorder %s24, 3
      %p202 = por %p200, %p201
      %p203 = scmp.ne.s32.totalorder %s194, %s195
      %p204 = scmp.eq.s32.totalorder %s24, 0
      %p205 = por %p203, %p204
      %p206 = scmp.ne.s32.totalorder %s194, %s195
      %p207 = scmp.eq.s32.totalorder %s25, 3
      %p208 = por %p206, %p207
      %p210 = scmp.ne.s32.totalorder %s195, %s209
      %p211 = scmp.eq.s32.totalorder %s25, 0
      %p212 = por %p210, %p211
      %s214 = sadd.s32 %s213, 1
      %p217 = scmp.eq.s32.totalorder %s19, 3
      %p218 = scmp.ne.s32.totalorder %s213, %s215
      %p219 = scmp.eq.s32.totalorder %s19, 0
      %p220 = por %p218, %p219
      %p221 = scmp.ne.s32.totalorder %s213, %s215
      %p222 = scmp.eq.s32.totalorder %s24, 3
      %p223 = por %p221, %p222
      %p224 = scmp.ne.s32.totalorder %s215, %s216
      %p225 = scmp.eq.s32.totalorder %s24, 0
      %p226 = por %p224, %p225
      %p227 = scmp.ne.s32.totalorder %s215, %s216
      %p228 = scmp.eq.s32.totalorder %s25, 3
      %p229 = por %p227, %p228
      %p231 = scmp.ne.s32.totalorder %s216, %s230
      %p232 = scmp.eq.s32.totalorder %s25, 0
      %p233 = por %p231, %p232
      %s235 = sadd.s32 %s234, 1
      %p238 = scmp.eq.s32.totalorder %s19, 3
      %p239 = scmp.ne.s32.totalorder %s234, %s236
      %p240 = scmp.eq.s32.totalorder %s19, 0
      %p241 = por %p239, %p240
      %p242 = scmp.ne.s32.totalorder %s234, %s236
      %p243 = scmp.eq.s32.totalorder %s24, 3
      %p244 = por %p242, %p243
      %p245 = scmp.ne.s32.totalorder %s236, %s237
      %p246 = scmp.eq.s32.totalorder %s24, 0
      %p247 = por %p245, %p246
      %p248 = scmp.ne.s32.totalorder %s236, %s237
      %p249 = scmp.eq.s32.totalorder %s25, 3
      %p250 = por %p248, %p249
      %p252 = scmp.ne.s32.totalorder %s237, %s251
      %p253 = scmp.eq.s32.totalorder %s25, 0
      %p254 = por %p252, %p253
      %s255 = ssub.s32 %s26, %s38
      %p256 = scmp.eq.s32.totalorder %s255, 0
      %s258 = sadd.s32 %s257, 1
      %s259 = scalar_select %p256, %s257, %s258
      %p262 = pneg %p256
      %p263 = scmp.eq.s32.totalorder %s19, 3
      %p264 = por %p262, %p263
      %p265 = scmp.ne.s32.totalorder %s257, %s260
      %p266 = scmp.eq.s32.totalorder %s19, 0
      %p267 = por %p265, %p266
      %p268 = scmp.ne.s32.totalorder %s257, %s260
      %p269 = scmp.eq.s32.totalorder %s24, 3
      %p270 = por %p268, %p269
      %p271 = scmp.ne.s32.totalorder %s260, %s261
      %p272 = scmp.eq.s32.totalorder %s24, 0
      %p273 = por %p271, %p272
      %p274 = scmp.ne.s32.totalorder %s260, %s261
      %p275 = scmp.eq.s32.totalorder %s25, 3
      %p276 = por %p274, %p275
      %p278 = scmp.ne.s32.totalorder %s261, %s277
      %p279 = scmp.eq.s32.totalorder %s25, 0
      %p280 = por %p278, %p279
      %p281 = scmp.le.s32.totalorder 1, %s19
      %p282 = scmp.lt.s32.totalorder %s19, 5
      %p283 = pnand %p281, %p282
      %p284 = pneg %p283
      // Predicated region
      $region9: #{tpu_custom_call.1} parent=5 // pred_check
        _
      $region10: #{tpu_custom_call.1} parent=5 // pred_check_branch
        %286 = sbr.rel (%p283) target = $region12
      $region11: #{tpu_custom_call.1} parent=5 // pred_region
        %s287 = ssub.s32 %s19, 1
        // Predicated region
        $region13: #{tpu_custom_call.1} parent=11 // pred_check
          %p288 = pneg %p184
        $region14: #{tpu_custom_call.1} parent=11 // pred_check_branch
          %290 = sbr.rel (%p288) target = $region16
        $region15: #{tpu_custom_call.1} parent=11 // pred_region
          %s292 = ssub.s32 32, 32
          %293 = vsyncadd [#allocation8], %s292
          %s295 = sshll.u32 [#allocation7], 4
          %s296 = int_to_ptr.vmem [resolvable:$true] %s295
          %298 = dma.hbm_to_vmem [thread:$0]  %s5, 32, %s296, [#allocation8]
        $region16: #{tpu_custom_call.1} parent=11 // pred_fallthru
          _
        // Predicated region
        $region17: #{tpu_custom_call.1} parent=11 // pred_check
          %p299 = pneg %p205
        $region18: #{tpu_custom_call.1} parent=11 // pred_check_branch
          %301 = sbr.rel (%p299) target = $region20
        $region19: #{tpu_custom_call.1} parent=11 // pred_region
          _
        $region20: #{tpu_custom_call.1} parent=11 // pred_fallthru
          _
        // Predicated region
        $region21: #{tpu_custom_call.1} parent=11 // pred_check
          %p302 = pneg %p226
        $region22: #{tpu_custom_call.1} parent=11 // pred_check_branch
          %304 = sbr.rel (%p302) target = $region24
        $region23: #{tpu_custom_call.1} parent=11 // pred_region
          _
        $region24: #{tpu_custom_call.1} parent=11 // pred_fallthru
          _
        // Predicated region
        $region25: #{tpu_custom_call.1} parent=11 // pred_check
          %p305 = pneg %p247
        $region26: #{tpu_custom_call.1} parent=11 // pred_check_branch
          %307 = sbr.rel (%p305) target = $region28
        $region27: #{tpu_custom_call.1} parent=11 // pred_region
          _
        $region28: #{tpu_custom_call.1} parent=11 // pred_fallthru
          _
      $region12: #{tpu_custom_call.1} parent=5 // pred_fallthru
        _
      %p308 = scmp.lt.s32.totalorder %s19, 4
      // Predicated region
      $region29: #{tpu_custom_call.1} parent=5 // pred_check
        %p309 = pneg %p308
      $region30: #{tpu_custom_call.1} parent=5 // pred_check_branch
        %311 = sbr.rel (%p309) target = $region32
      $region31: #{tpu_custom_call.1} parent=5 // pred_region
        // Predicated region
        $region33: #{tpu_custom_call.1} parent=31 // pred_check
          %p312 = pneg %p53
        $region34: #{tpu_custom_call.1} parent=31 // pred_check_branch
          %314 = sbr.rel (%p312) target = $region36
        $region35: #{tpu_custom_call.1} parent=31 // pred_region
          %s315 = sand.u32 %s43, 1
          %s316 = sand.u32 %s43, 1
          %s317 = smul.addr %s316, 32
          %s318 = scalar_lea.vmem [#allocation4], %s317
          %s319 = smul.addr %s26, 8
          %s320 = sadd.s32 %s27, %s319
          %s321 = smul.addr %s320, 8
          %s322 = scalar_lea.vmem %s0, %s321
          // Predicated region
          $region37: #{tpu_custom_call.1} parent=35 // pred_check
            _
          $region38: #{tpu_custom_call.1} parent=35 // pred_check_branch
            %324 = sbr.rel (0) target = $region40
          $region39: #{tpu_custom_call.1} parent=35 // pred_region
            // Predicated region
            $region41: #{tpu_custom_call.1} parent=39 // pred_check
              _
            $region42: #{tpu_custom_call.1} parent=39 // pred_check_branch
              %326 = sbr.rel (0) target = $region44
            $region43: #{tpu_custom_call.1} parent=39 // pred_region
              // Predicated region
              $region56: #{tpu_custom_call.1} parent=43 // pred_check
                _
              $region57: #{tpu_custom_call.1} parent=43 // pred_check_branch
                %348 = sbr.rel (0) target = $region59
              $region58: #{tpu_custom_call.1} parent=43 // pred_region
                loop: start=0, step=1, limit=1
                $region60: #{tpu_custom_call.1} parent=58 // loop_pre_header
                  _
                $region61: #{tpu_custom_call.1} parent=58 // loop_header
                  %s350 = sphi 0, %s354
                  %p351 = scmp.ge.s32.totalorder %s350, 1
                  %s355 = sphi %s322, %s322
                  %s356 = sphi %s318, %s318
                $region62: #{tpu_custom_call.1} parent=58 // loop_header_branch
                  %353 = sbr.rel (%p351) target = $region66
                $region63: #{tpu_custom_call.1} parent=58 // loop_body
                  %v357 = vld [vmem:[%s355] sm:$0xff]
                  %358 = vst [vmem:[%s356] sm:$0xff] %v357
                  %v359 = vld [vmem:[%s355 + $0x10] sm:$0xff]
                  %360 = vst [vmem:[%s356 + $0x8] sm:$0xff] %v359
                  %v361 = vld [vmem:[%s355 + $0x20] sm:$0xff]
                  %362 = vst [vmem:[%s356 + $0x10] sm:$0xff] %v361
                  %v363 = vld [vmem:[%s355 + $0x30] sm:$0xff]
                  %364 = vst [vmem:[%s356 + $0x18] sm:$0xff] %v363
                $region64: #{tpu_custom_call.1} parent=58 // loop_footer
                  %s354 = sadd.s32 1, %s350
                $region65: #{tpu_custom_call.1} parent=58 // loop_footer_branch
                  %349 = sbr.rel target = $region61
                $region66: #{tpu_custom_call.1} parent=58 // loop_exit
                  _
              $region59: #{tpu_custom_call.1} parent=43 // pred_fallthru
                _
              // Predicated region
              $region67: #{tpu_custom_call.1} parent=43 // pred_check
                _
              $region68: #{tpu_custom_call.1} parent=43 // pred_check_branch
                %366 = sbr.rel target = $region70
              $region69: #{tpu_custom_call.1} parent=43 // pred_region
                _
              $region70: #{tpu_custom_call.1} parent=43 // pred_fallthru
                _
            $region44: #{tpu_custom_call.1} parent=39 // pred_fallthru
              _
            // Predicated region
            $region45: #{tpu_custom_call.1} parent=39 // pred_check
              _
            $region46: #{tpu_custom_call.1} parent=39 // pred_check_branch
              %328 = sbr.rel target = $region48
            $region47: #{tpu_custom_call.1} parent=39 // pred_region
              %s330 = ssub.s32 256, 1
              loop: start=0, step=1, limit=1
              $region49: #{tpu_custom_call.1} parent=47 // loop_pre_header
                _
              $region50: #{tpu_custom_call.1} parent=47 // loop_header
                %s332 = sphi 0, %s336
                %p333 = scmp.ge.s32.totalorder %s332, 1
                %s337 = sphi %s322, %s322
                %s338 = sphi %s318, %s318
              $region51: #{tpu_custom_call.1} parent=47 // loop_header_branch
                %335 = sbr.rel (%p333) target = $region55
              $region52: #{tpu_custom_call.1} parent=47 // loop_body
                %v339 = vld [vmem:[%s337] sm:%s330]
                %340 = vst [vmem:[%s338] sm:%s330] %v339
                %v341 = vld [vmem:[%s337 + $0x10] sm:%s330]
                %342 = vst [vmem:[%s338 + $0x8] sm:%s330] %v341
                %v343 = vld [vmem:[%s337 + $0x20] sm:%s330]
                %344 = vst [vmem:[%s338 + $0x10] sm:%s330] %v343
                %v345 = vld [vmem:[%s337 + $0x30] sm:%s330]
                %346 = vst [vmem:[%s338 + $0x18] sm:%s330] %v345
              $region53: #{tpu_custom_call.1} parent=47 // loop_footer
                %s336 = sadd.s32 1, %s332
              $region54: #{tpu_custom_call.1} parent=47 // loop_footer_branch
                %331 = sbr.rel target = $region50
              $region55: #{tpu_custom_call.1} parent=47 // loop_exit
                _
            $region48: #{tpu_custom_call.1} parent=39 // pred_fallthru
              _
          $region40: #{tpu_custom_call.1} parent=35 // pred_fallthru
            _
          %367 = vnop
        $region36: #{tpu_custom_call.1} parent=31 // pred_fallthru
          _
        // Predicated region
        $region71: #{tpu_custom_call.1} parent=31 // pred_check
          %p368 = pneg %p79
        $region72: #{tpu_custom_call.1} parent=31 // pred_check_branch
          %370 = sbr.rel (%p368) target = $region74
        $region73: #{tpu_custom_call.1} parent=31 // pred_region
          %p371 = scmp.lt.s32.totalorder %s26, 1
          %s372 = scalar_select %p371, %s26, 1
          %s373 = smul.addr %s372, 8
          %s374 = scalar_lea.vmem %s1, %s373
        $region74: #{tpu_custom_call.1} parent=31 // pred_fallthru
          _
        // Predicated region
        $region75: #{tpu_custom_call.1} parent=31 // pred_check
          %p375 = pneg %p105
        $region76: #{tpu_custom_call.1} parent=31 // pred_check_branch
          %377 = sbr.rel (%p375) target = $region78
        $region77: #{tpu_custom_call.1} parent=31 // pred_region
          %p378 = scmp.lt.s32.totalorder %s26, 1
          %s379 = scalar_select %p378, %s26, 1
          %s380 = smul.addr %s379, 8
          %s381 = scalar_lea.vmem %s2, %s380
        $region78: #{tpu_custom_call.1} parent=31 // pred_fallthru
          _
        // Predicated region
        $region79: #{tpu_custom_call.1} parent=31 // pred_check
          %p382 = pneg %p131
        $region80: #{tpu_custom_call.1} parent=31 // pred_check_branch
          %384 = sbr.rel (%p382) target = $region82
        $region81: #{tpu_custom_call.1} parent=31 // pred_region
          %s385 = sand.u32 %s121, 1
          %s386 = scalar_lea.sflag [#allocation6], %s385
          %s387 = sand.u32 %s121, 1
          %s388 = smul.addr %s387, 8
          %s389 = scalar_lea.vmem [#allocation5], %s388
          %s391 = ssub.s32 128, 128
          %392 = vsyncadd %s386, %s391
          %s393 = smul.addr %s26, 128
          %s394 = scalar_lea.hbm %s3, %s393
          %s396 = sshll.u32 %s389, 4
          %s397 = int_to_ptr.vmem [resolvable:$true] %s396
          %399 = dma.hbm_to_vmem [thread:$0]  %s394, 128, %s397, %s386
        $region82: #{tpu_custom_call.1} parent=31 // pred_fallthru
          _
        // Predicated region
        $region83: #{tpu_custom_call.1} parent=31 // pred_check
          %p400 = pneg %p157
        $region84: #{tpu_custom_call.1} parent=31 // pred_check_branch
          %402 = sbr.rel (%p400) target = $region86
        $region85: #{tpu_custom_call.1} parent=31 // pred_region
          %p403 = scmp.lt.s32.totalorder %s26, 1
          %s404 = scalar_select %p403, %s26, 1
          %s405 = smul.addr %s404, 8
          %s406 = scalar_lea.vmem %s4, %s405
        $region86: #{tpu_custom_call.1} parent=31 // pred_fallthru
          _
      $region32: #{tpu_custom_call.1} parent=5 // pred_fallthru
        _
      %p407 = scmp.le.s32.totalorder 1, %s19
      %p408 = scmp.lt.s32.totalorder %s19, 5
      %p409 = pnand %p407, %p408
      %p410 = pneg %p409
      // Predicated region
      $region87: #{tpu_custom_call.1} parent=5 // pred_check
        _
      $region88: #{tpu_custom_call.1} parent=5 // pred_check_branch
        %412 = sbr.rel (%p409) target = $region90
      $region89: #{tpu_custom_call.1} parent=5 // pred_region
        %s413 = ssub.s32 %s19, 1
        %s414 = sand.u32 %s46, 1
        %s415 = sand.u32 %s46, 1
        %s416 = smul.addr %s415, 32
        %s417 = scalar_lea.vmem [#allocation4], %s416
        // Predicated region
        $region91: #{tpu_custom_call.1} parent=89 // pred_check
          %p418 = pneg %p59
        $region92: #{tpu_custom_call.1} parent=89 // pred_check_branch
          %420 = sbr.rel (%p418) target = $region94
        $region93: #{tpu_custom_call.1} parent=89 // pred_region
          _
        $region94: #{tpu_custom_call.1} parent=89 // pred_fallthru
          _
        %s421 = sand.u32 %s124, 1
        %s422 = scalar_lea.sflag [#allocation6], %s421
        %s423 = sand.u32 %s124, 1
        %s424 = smul.addr %s423, 8
        %s425 = scalar_lea.vmem [#allocation5], %s424
        // Predicated region
        $region95: #{tpu_custom_call.1} parent=89 // pred_check
          %p426 = pneg %p137
        $region96: #{tpu_custom_call.1} parent=89 // pred_check_branch
          %428 = sbr.rel (%p426) target = $region98
        $region97: #{tpu_custom_call.1} parent=89 // pred_region
          %429 = dma.done %s422, 128
        $region98: #{tpu_custom_call.1} parent=89 // pred_fallthru
          _
        // Predicated region
        $region99: #{tpu_custom_call.1} parent=89 // pred_check
          %p430 = pneg %p184
        $region100: #{tpu_custom_call.1} parent=89 // pred_check_branch
          %432 = sbr.rel (%p430) target = $region102
        $region101: #{tpu_custom_call.1} parent=89 // pred_region
          %433 = dma.done [#allocation8], 32
        $region102: #{tpu_custom_call.1} parent=89 // pred_fallthru
          _
        %s434 = sand.u32 %s46, 1
        %s435 = sand.u32 %s46, 1
        %s436 = smul.addr %s435, 32
        %s437 = scalar_lea.vmem [#allocation4], %s436
        %p438 = pneg %p59
        %p439 = pneg %p56
        %p440 = scmp.lt.s32.totalorder %s28, 1
        %s441 = scalar_select %p440, %s28, 1
        %s442 = smul.addr %s441, 8
        %s443 = scalar_lea.vmem %s1, %s442
        %p444 = pneg %p85
        %p445 = pneg %p82
        %p446 = scmp.lt.s32.totalorder %s28, 1
        %s447 = scalar_select %p446, %s28, 1
        %s448 = smul.addr %s447, 8
        %s449 = scalar_lea.vmem %s2, %s448
        %p450 = pneg %p111
        %p451 = pneg %p108
        %s452 = sand.u32 %s124, 1
        %s453 = scalar_lea.sflag [#allocation6], %s452
        %s454 = sand.u32 %s124, 1
        %s455 = smul.addr %s454, 8
        %s456 = scalar_lea.vmem [#allocation5], %s455
        %p457 = pneg %p137
        %p458 = pneg %p134
        %p459 = scmp.lt.s32.totalorder %s28, 1
        %s460 = scalar_select %p459, %s28, 1
        %s461 = smul.addr %s460, 8
        %s462 = scalar_lea.vmem %s4, %s461
        %p463 = pneg %p163
        %p464 = pneg %p160
        %p465 = pneg %p184
        %p466 = pneg %p181
        %p467 = pneg %p205
        %p468 = pneg %p202
        %p469 = pneg %p226
        %p470 = pneg %p223
        %p471 = pneg %p247
        %p472 = pneg %p244
        %p473 = pneg %p273
        %p474 = pneg %p270
        %p475 = scmp.lt.s32.totalorder %s28, 1
        %s476 = scalar_select %p475, %s28, 1
        %s477 = smul.addr %s476, 4
        %s478 = smul.addr %s477, 8
        %s479 = scalar_lea.vmem %s9, %s478
        %p480 = scmp.lt.s32.totalorder %s28, 1
        %s481 = scalar_select %p480, %s28, 1
        %s482 = smul.addr %s481, 8
        %s483 = scalar_lea.vmem %s1, %s482
        %p484 = scmp.lt.s32.totalorder %s28, 1
        %s485 = scalar_select %p484, %s28, 1
        %s486 = smul.addr %s485, 8
        %s487 = scalar_lea.vmem %s2, %s486
        %p488 = scmp.lt.s32.totalorder %s28, 1
        %s489 = scalar_select %p488, %s28, 1
        %s490 = smul.addr %s489, 8
        %s491 = scalar_lea.vmem %s4, %s490
        %p492 = scmp.lt.s32.totalorder %s28, 1
        %s493 = scalar_select %p492, %s28, 1
        %s494 = smul.addr %s493, 4
        %s495 = smul.addr %s494, 8
        %s496 = scalar_lea.vmem %s9, %s495
        %p497 = scmp.eq.s32.totalorder %s29, 0
        // Predicated region
        $region103: #{tpu_custom_call.1} parent=89 // pred_check
          %p498 = pneg %p497
        $region104: #{tpu_custom_call.1} parent=89 // pred_check_branch
          %500 = sbr.rel (%p498) target = $region106
        $region105: #{tpu_custom_call.1} parent=89 // pred_region
          %vm501 = vcmask 7168
          %502 = vst.msk [vmem:[#allocation2] sm:$0xff] %vm501, 0.0
          %503 = vst.msk [vmem:[#allocation2 + $0x8] sm:$0xff] %vm501, 0.0
          %504 = vst.msk [vmem:[#allocation2 + $0x10] sm:$0xff] %vm501, 0.0
          %505 = vst.msk [vmem:[#allocation2 + $0x18] sm:$0xff] %vm501, 0.0
          %506 = vst.msk [vmem:[#allocation3] sm:$0xff] %vm501, -inf
          %507 = vst.msk [vmem:[#allocation3 + $0x8] sm:$0xff] %vm501, -inf
          %508 = vst.msk [vmem:[#allocation3 + $0x10] sm:$0xff] %vm501, -inf
          %509 = vst.msk [vmem:[#allocation3 + $0x18] sm:$0xff] %vm501, -inf
        $region106: #{tpu_custom_call.1} parent=89 // pred_fallthru
          _
        %v510 = vld [vmem:[%s417] sm:$0xff]
        %v511 = vld [vmem:[%s417 + $0x8] sm:$0xff]
        %v512 = vld [vmem:[%s417 + $0x10] sm:$0xff]
        %v513 = vld [vmem:[%s417 + $0x18] sm:$0xff]
        %v514 = vld [vmem:[#allocation2] sm:$0xff]
        %v515 = vld [vmem:[#allocation2 + $0x8] sm:$0xff]
        %v516 = vld [vmem:[#allocation2 + $0x10] sm:$0xff]
        %v517 = vld [vmem:[#allocation2 + $0x18] sm:$0xff]
        %518 = vadd.xlane.f32.xlu0 %v510
        %v519 = vpop.xlane.xlu0 %518
        %520 = vadd.xlane.f32.xlu0 %v511
        %v521 = vpop.xlane.xlu0 %520
        %522 = vadd.xlane.f32.xlu0 %v512
        %v523 = vpop.xlane.xlu0 %522
        %524 = vadd.xlane.f32.xlu0 %v513
        %v525 = vpop.xlane.xlu0 %524
        %v526 = vadd.f32 %v514, %v519
        %v527 = vadd.f32 %v515, %v521
        %v528 = vadd.f32 %v516, %v523
        %v529 = vadd.f32 %v517, %v525
        %vm530 = vcmask 7168
        %531 = vst.msk [vmem:[#allocation2] sm:$0xff] %vm530, %v526
        %532 = vst.msk [vmem:[#allocation2 + $0x8] sm:$0xff] %vm530, %v527
        %533 = vst.msk [vmem:[#allocation2 + $0x10] sm:$0xff] %vm530, %v528
        %534 = vst.msk [vmem:[#allocation2 + $0x18] sm:$0xff] %vm530, %v529
        %v535 = vld [vmem:[#allocation3] sm:$0xff]
        %v536 = vld [vmem:[#allocation3 + $0x8] sm:$0xff]
        %v537 = vld [vmem:[#allocation3 + $0x10] sm:$0xff]
        %v538 = vld [vmem:[#allocation3 + $0x18] sm:$0xff]
        %539 = vmax.xlane.f32.xlu0 %v510
        %v540 = vpop.xlane.xlu0 %539
        %541 = vmax.xlane.f32.xlu0 %v511
        %v542 = vpop.xlane.xlu0 %541
        %543 = vmax.xlane.f32.xlu0 %v512
        %v544 = vpop.xlane.xlu0 %543
        %545 = vmax.xlane.f32.xlu0 %v513
        %v546 = vpop.xlane.xlu0 %545
        %v547 = vmax.f32 %v535, %v540
        %v548 = vmax.f32 %v536, %v542
        %v549 = vmax.f32 %v537, %v544
        %v550 = vmax.f32 %v538, %v546
        %551 = vst.msk [vmem:[#allocation3] sm:$0xff] %vm530, %v547
        %552 = vst.msk [vmem:[#allocation3 + $0x8] sm:$0xff] %vm530, %v548
        %553 = vst.msk [vmem:[#allocation3 + $0x10] sm:$0xff] %vm530, %v549
        %554 = vst.msk [vmem:[#allocation3 + $0x18] sm:$0xff] %vm530, %v550
        %p555 = scmp.eq.s32.totalorder %s29, 1
        // Predicated region
        $region107: #{tpu_custom_call.1} parent=89 // pred_check
          %p556 = pneg %p555
        $region108: #{tpu_custom_call.1} parent=89 // pred_check_branch
          %558 = sbr.rel (%p556) target = $region110
        $region109: #{tpu_custom_call.1} parent=89 // pred_region
          %v559 = vld [vmem:[#allocation2] sm:$0xff]
          %v560 = vld [vmem:[#allocation2 + $0x8] sm:$0xff]
          %v561 = vld [vmem:[#allocation2 + $0x10] sm:$0xff]
          %v562 = vld [vmem:[#allocation2 + $0x18] sm:$0xff]
          %v563 = vmul.f32 %v559, 0.00390625
          %v564 = vmul.f32 %v560, 0.00390625
          %v565 = vmul.f32 %v561, 0.00390625
          %v566 = vmul.f32 %v562, 0.00390625
          %v567 = vld [vmem:[#allocation3] sm:$0xff]
          %v568 = vld [vmem:[#allocation3 + $0x8] sm:$0xff]
          %v569 = vld [vmem:[#allocation3 + $0x10] sm:$0xff]
          %v570 = vld [vmem:[#allocation3 + $0x18] sm:$0xff]
          %575 = vrot.lane.b32.xlu0 %v567, 1
          %v576 = vpop.permute.xlu0 %575
          %577 = vrot.lane.b32.xlu0 %v568, 1
          %v578 = vpop.permute.xlu0 %577
          %579 = vrot.lane.b32.xlu0 %v569, 1
          %v580 = vpop.permute.xlu0 %579
          %581 = vrot.lane.b32.xlu0 %v570, 1
          %v582 = vpop.permute.xlu0 %581
          %v587 = vsel %vm530, %v563, %v576
          %v588 = vsel %vm530, %v564, %v578
          %v589 = vsel %vm530, %v565, %v580
          %v590 = vsel %vm530, %v566, %v582
          %v591 = vld [vmem:[#allocation7] sm:$0x3]
          %vm592 = vcmask 261120
          %v594 = vsel %vm592, %v591, 0
          %596 = vmatprep.subr.mxu0 0.0
          %597 = vmatpush1.msra.mxu0 0.0
          %598 = vmatprep.subr.mxu0 0.0
          %599 = vmatpush1.msra.mxu0 0.0
          %600 = vmatprep.subr.mxu0 0.0
          %601 = vmatpush1.msra.mxu0 0.0
          %602 = vmatprep.subr.mxu0 0.0
          %603 = vmatpush1.msra.mxu0 0.0
          %604 = vmatprep.subr.mxu0 0.0
          %605 = vmatpush1.msra.mxu0 0.0
          %606 = vmatprep.subr.mxu0 0.0
          %607 = vmatpush1.msra.mxu0 0.0
          %608 = vmatprep.subr.mxu0 0.0
          %609 = vmatpush1.msra.mxu0 0.0
          %610 = vmatprep.subr.mxu0 0.0
          %611 = vmatpush1.msra.mxu0 0.0
          %612 = vmatprep.subr.mxu0 0.0
          %613 = vmatpush1.msra.mxu0 0.0
          %614 = vmatprep.subr.mxu0 0.0
          %615 = vmatpush1.msra.mxu0 0.0
          %616 = vmatprep.subr.mxu0 0.0
          %617 = vmatpush1.msra.mxu0 0.0
          %618 = vmatprep.subr.mxu0 0.0
          %619 = vmatpush1.msra.mxu0 0.0
          %620 = vmatprep.subr.mxu0 0.0
          %621 = vmatpush1.msra.mxu0 %v590
          %622 = vmatprep.subr.mxu0 0.0
          %623 = vmatpush1.msra.mxu0 %v589
          %624 = vmatprep.subr.mxu0 0.0
          %625 = vmatpush1.msra.mxu0 %v588
          %626 = vmatprep.subr.mxu0 0.0
          %627 = vmatpush1.msra.mxu0 %v587
          %628 = vmatprep.subr.mxu0 0.0
          %629 = vmatpush2.msra.mxu0 0.0
          %630 = vmatprep.subr.mxu0 0.0
          %631 = vmatpush2.msra.mxu0 0.0
          %632 = vmatprep.subr.mxu0 0.0
          %633 = vmatpush2.msra.mxu0 0.0
          %634 = vmatprep.subr.mxu0 0.0
          %635 = vmatpush2.msra.mxu0 0.0
          %636 = vmatprep.subr.mxu0 0.0
          %637 = vmatpush2.msra.mxu0 0.0
          %638 = vmatprep.subr.mxu0 0.0
          %639 = vmatpush2.msra.mxu0 0.0
          %640 = vmatprep.subr.mxu0 0.0
          %641 = vmatpush2.msra.mxu0 0.0
          %642 = vmatprep.subr.mxu0 0.0
          %643 = vmatpush2.msra.mxu0 0.0
          %644 = vmatprep.subr.mxu0 0.0
          %645 = vmatpush2.msra.mxu0 0.0
          %646 = vmatprep.subr.mxu0 0.0
          %647 = vmatpush2.msra.mxu0 0.0
          %648 = vmatprep.subr.mxu0 0.0
          %649 = vmatpush2.msra.mxu0 0.0
          %650 = vmatprep.subr.mxu0 0.0
          %651 = vmatpush2.msra.mxu0 0.0
          %652 = vmatprep.subr.mxu0 0.0
          %653 = vmatpush2.msra.mxu0 0.0
          %654 = vmatprep.subr.mxu0 0.0
          %655 = vmatpush2.msra.mxu0 0.0
          %656 = vmatprep.subr.mxu0 0.0
          %657 = vmatpush2.msra.mxu0 0.0
          %658 = vmatprep.subr.mxu0 0.0
          %659 = vmatpush2.msra.mxu0 0.0
          %660 = vmatprep.mubr.f32.mxu0 0.0
          %661 = vmatmul.mubr.f32.gmra.mxu0 %v594
          %v662 = vpop.f32.mrf.mxu0
          %v663 = vadd.f32 0.0, %v662
          %v664 = vpop.f32.mrf.mxu0
          %665 = vdwg.mxu0
          %v666 = vmax.f32 %v663, 0.0
          %v667 = vld [vmem:[%s6] sm:$0xff]
          %v668 = vld [vmem:[%s6 + $0x8] sm:$0xff]
          %v669 = vld [vmem:[%s6 + $0x10] sm:$0xff]
          %v670 = vld [vmem:[%s6 + $0x18] sm:$0xff]
          %vm671 = vcmask 15360
          %v673 = vsel %vm671, %v667, 0
          %v676 = vsel %vm671, %v668, 0
          %v679 = vsel %vm671, %v669, 0
          %v682 = vsel %vm671, %v670, 0
          %vm684 = vcmask 1041408
          %v686 = vsel %vm684, %v666, 0
          %688 = vmatprep.subr.mxu0 0.0
          %689 = vmatpush1.msra.mxu0 0.0
          %690 = vmatprep.subr.mxu0 0.0
          %691 = vmatpush1.msra.mxu0 0.0
          %692 = vmatprep.subr.mxu0 0.0
          %693 = vmatpush1.msra.mxu0 0.0
          %694 = vmatprep.subr.mxu0 0.0
          %695 = vmatpush1.msra.mxu0 0.0
          %696 = vmatprep.subr.mxu0 0.0
          %697 = vmatpush1.msra.mxu0 0.0
          %698 = vmatprep.subr.mxu0 0.0
          %699 = vmatpush1.msra.mxu0 0.0
          %700 = vmatprep.subr.mxu0 0.0
          %701 = vmatpush1.msra.mxu0 0.0
          %702 = vmatprep.subr.mxu0 0.0
          %703 = vmatpush1.msra.mxu0 0.0
          %704 = vmatprep.subr.mxu0 0.0
          %705 = vmatpush1.msra.mxu0 0.0
          %706 = vmatprep.subr.mxu0 0.0
          %707 = vmatpush1.msra.mxu0 0.0
          %708 = vmatprep.subr.mxu0 0.0
          %709 = vmatpush1.msra.mxu0 0.0
          %710 = vmatprep.subr.mxu0 0.0
          %711 = vmatpush1.msra.mxu0 0.0
          %712 = vmatprep.subr.mxu0 0.0
          %713 = vmatpush1.msra.mxu0 0.0
          %714 = vmatprep.subr.mxu0 0.0
          %715 = vmatpush1.msra.mxu0 0.0
          %716 = vmatprep.subr.mxu0 0.0
          %717 = vmatpush1.msra.mxu0 0.0
          %718 = vmatprep.subr.mxu0 0.0
          %719 = vmatpush1.msra.mxu0 %v686
          %720 = vmatprep.subr.mxu0 0.0
          %721 = vmatpush2.msra.mxu0 0.0
          %722 = vmatprep.subr.mxu0 0.0
          %723 = vmatpush2.msra.mxu0 0.0
          %724 = vmatprep.subr.mxu0 0.0
          %725 = vmatpush2.msra.mxu0 0.0
          %726 = vmatprep.subr.mxu0 0.0
          %727 = vmatpush2.msra.mxu0 0.0
          %728 = vmatprep.subr.mxu0 0.0
          %729 = vmatpush2.msra.mxu0 0.0
          %730 = vmatprep.subr.mxu0 0.0
          %731 = vmatpush2.msra.mxu0 0.0
          %732 = vmatprep.subr.mxu0 0.0
          %733 = vmatpush2.msra.mxu0 0.0
          %734 = vmatprep.subr.mxu0 0.0
          %735 = vmatpush2.msra.mxu0 0.0
          %736 = vmatprep.subr.mxu0 0.0
          %737 = vmatpush2.msra.mxu0 0.0
          %738 = vmatprep.subr.mxu0 0.0
          %739 = vmatpush2.msra.mxu0 0.0
          %740 = vmatprep.subr.mxu0 0.0
          %741 = vmatpush2.msra.mxu0 0.0
          %742 = vmatprep.subr.mxu0 0.0
          %743 = vmatpush2.msra.mxu0 0.0
          %744 = vmatprep.subr.mxu0 0.0
          %745 = vmatpush2.msra.mxu0 0.0
          %746 = vmatprep.subr.mxu0 0.0
          %747 = vmatpush2.msra.mxu0 0.0
          %748 = vmatprep.subr.mxu0 0.0
          %749 = vmatpush2.msra.mxu0 0.0
          %750 = vmatprep.subr.mxu0 0.0
          %751 = vmatpush2.msra.mxu0 0.0
          %752 = vmatprep.mubr.f32.mxu0 0.0
          %753 = vmatmul.mubr.f32.gmra.mxu0 %v673
          %v754 = vpop.f32.mrf.mxu0
          %v755 = vadd.f32 0.0, %v754
          %v756 = vpop.f32.mrf.mxu0
          %757 = vmatprep.mubr.f32.mxu0 0.0
          %758 = vmatmul.mubr.f32.gmra.mxu0 %v676
          %v759 = vpop.f32.mrf.mxu0
          %v760 = vadd.f32 0.0, %v759
          %v761 = vpop.f32.mrf.mxu0
          %762 = vmatprep.mubr.f32.mxu0 0.0
          %763 = vmatmul.mubr.f32.gmra.mxu0 %v679
          %v764 = vpop.f32.mrf.mxu0
          %v765 = vadd.f32 0.0, %v764
          %v766 = vpop.f32.mrf.mxu0
          %767 = vmatprep.mubr.f32.mxu0 0.0
          %768 = vmatmul.mubr.f32.gmra.mxu0 %v682
          %v769 = vpop.f32.mrf.mxu0
          %v770 = vadd.f32 0.0, %v769
          %v771 = vpop.f32.mrf.mxu0
          %772 = vdwg.mxu0
          %v773 = vld [vmem:[%s483] sm:$0xff]
          %v774 = vld [vmem:[%s487] sm:$0xff]
          %v776 = vsel %vm592, %v773, 0
          %778 = vmatprep.subr.mxu0 0.0
          %779 = vmatpush1.msra.mxu0 0.0
          %780 = vmatprep.subr.mxu0 0.0
          %781 = vmatpush1.msra.mxu0 0.0
          %782 = vmatprep.subr.mxu0 0.0
          %783 = vmatpush1.msra.mxu0 0.0
          %784 = vmatprep.subr.mxu0 0.0
          %785 = vmatpush1.msra.mxu0 0.0
          %786 = vmatprep.subr.mxu0 0.0
          %787 = vmatpush1.msra.mxu0 0.0
          %788 = vmatprep.subr.mxu0 0.0
          %789 = vmatpush1.msra.mxu0 0.0
          %790 = vmatprep.subr.mxu0 0.0
          %791 = vmatpush1.msra.mxu0 0.0
          %792 = vmatprep.subr.mxu0 0.0
          %793 = vmatpush1.msra.mxu0 0.0
          %794 = vmatprep.subr.mxu0 0.0
          %795 = vmatpush1.msra.mxu0 0.0
          %796 = vmatprep.subr.mxu0 0.0
          %797 = vmatpush1.msra.mxu0 0.0
          %798 = vmatprep.subr.mxu0 0.0
          %799 = vmatpush1.msra.mxu0 0.0
          %800 = vmatprep.subr.mxu0 0.0
          %801 = vmatpush1.msra.mxu0 0.0
          %802 = vmatprep.subr.mxu0 0.0
          %803 = vmatpush1.msra.mxu0 %v770
          %804 = vmatprep.subr.mxu0 0.0
          %805 = vmatpush1.msra.mxu0 %v765
          %806 = vmatprep.subr.mxu0 0.0
          %807 = vmatpush1.msra.mxu0 %v760
          %808 = vmatprep.subr.mxu0 0.0
          %809 = vmatpush1.msra.mxu0 %v755
          %810 = vmatprep.subr.mxu0 0.0
          %811 = vmatpush2.msra.mxu0 0.0
          %812 = vmatprep.subr.mxu0 0.0
          %813 = vmatpush2.msra.mxu0 0.0
          %814 = vmatprep.subr.mxu0 0.0
          %815 = vmatpush2.msra.mxu0 0.0
          %816 = vmatprep.subr.mxu0 0.0
          %817 = vmatpush2.msra.mxu0 0.0
          %818 = vmatprep.subr.mxu0 0.0
          %819 = vmatpush2.msra.mxu0 0.0
          %820 = vmatprep.subr.mxu0 0.0
          %821 = vmatpush2.msra.mxu0 0.0
          %822 = vmatprep.subr.mxu0 0.0
          %823 = vmatpush2.msra.mxu0 0.0
          %824 = vmatprep.subr.mxu0 0.0
          %825 = vmatpush2.msra.mxu0 0.0
          %826 = vmatprep.subr.mxu0 0.0
          %827 = vmatpush2.msra.mxu0 0.0
          %828 = vmatprep.subr.mxu0 0.0
          %829 = vmatpush2.msra.mxu0 0.0
          %830 = vmatprep.subr.mxu0 0.0
          %831 = vmatpush2.msra.mxu0 0.0
          %832 = vmatprep.subr.mxu0 0.0
          %833 = vmatpush2.msra.mxu0 0.0
          %834 = vmatprep.subr.mxu0 0.0
          %835 = vmatpush2.msra.mxu0 0.0
          %836 = vmatprep.subr.mxu0 0.0
          %837 = vmatpush2.msra.mxu0 0.0
          %838 = vmatprep.subr.mxu0 0.0
          %839 = vmatpush2.msra.mxu0 0.0
          %840 = vmatprep.subr.mxu0 0.0
          %841 = vmatpush2.msra.mxu0 0.0
          %842 = vmatprep.mubr.f32.mxu0 0.0
          %843 = vmatmul.mubr.f32.gmra.mxu0 %v776
          %v844 = vpop.f32.mrf.mxu0
          %v845 = vadd.f32 %v774, %v844
          %v846 = vpop.f32.mrf.mxu0
          %847 = vdwg.mxu0
          %v848 = vld [vmem:[%s425] sm:$0xff]
          %v849 = vld [vmem:[%s491] sm:$0xff]
          %854 = vrot.lane.b32.xlu0 %v755, 127
          %v855 = vpop.permute.xlu0 %854
          %856 = vrot.lane.b32.xlu0 %v760, 127
          %v857 = vpop.permute.xlu0 %856
          %858 = vrot.lane.b32.xlu0 %v765, 127
          %v859 = vpop.permute.xlu0 %858
          %860 = vrot.lane.b32.xlu0 %v770, 127
          %v861 = vpop.permute.xlu0 %860
          %v867 = vsel %vm592, %v848, 0
          %869 = vmatprep.subr.mxu0 0.0
          %870 = vmatpush1.msra.mxu0 0.0
          %871 = vmatprep.subr.mxu0 0.0
          %872 = vmatpush1.msra.mxu0 0.0
          %873 = vmatprep.subr.mxu0 0.0
          %874 = vmatpush1.msra.mxu0 0.0
          %875 = vmatprep.subr.mxu0 0.0
          %876 = vmatpush1.msra.mxu0 0.0
          %877 = vmatprep.subr.mxu0 0.0
          %878 = vmatpush1.msra.mxu0 0.0
          %879 = vmatprep.subr.mxu0 0.0
          %880 = vmatpush1.msra.mxu0 0.0
          %881 = vmatprep.subr.mxu0 0.0
          %882 = vmatpush1.msra.mxu0 0.0
          %883 = vmatprep.subr.mxu0 0.0
          %884 = vmatpush1.msra.mxu0 0.0
          %885 = vmatprep.subr.mxu0 0.0
          %886 = vmatpush1.msra.mxu0 0.0
          %887 = vmatprep.subr.mxu0 0.0
          %888 = vmatpush1.msra.mxu0 0.0
          %889 = vmatprep.subr.mxu0 0.0
          %890 = vmatpush1.msra.mxu0 0.0
          %891 = vmatprep.subr.mxu0 0.0
          %892 = vmatpush1.msra.mxu0 0.0
          %893 = vmatprep.subr.mxu0 0.0
          %894 = vmatpush1.msra.mxu0 %v861
          %895 = vmatprep.subr.mxu0 0.0
          %896 = vmatpush1.msra.mxu0 %v859
          %897 = vmatprep.subr.mxu0 0.0
          %898 = vmatpush1.msra.mxu0 %v857
          %899 = vmatprep.subr.mxu0 0.0
          %900 = vmatpush1.msra.mxu0 %v855
          %901 = vmatprep.subr.mxu0 0.0
          %902 = vmatpush2.msra.mxu0 0.0
          %903 = vmatprep.subr.mxu0 0.0
          %904 = vmatpush2.msra.mxu0 0.0
          %905 = vmatprep.subr.mxu0 0.0
          %906 = vmatpush2.msra.mxu0 0.0
          %907 = vmatprep.subr.mxu0 0.0
          %908 = vmatpush2.msra.mxu0 0.0
          %909 = vmatprep.subr.mxu0 0.0
          %910 = vmatpush2.msra.mxu0 0.0
          %911 = vmatprep.subr.mxu0 0.0
          %912 = vmatpush2.msra.mxu0 0.0
          %913 = vmatprep.subr.mxu0 0.0
          %914 = vmatpush2.msra.mxu0 0.0
          %915 = vmatprep.subr.mxu0 0.0
          %916 = vmatpush2.msra.mxu0 0.0
          %917 = vmatprep.subr.mxu0 0.0
          %918 = vmatpush2.msra.mxu0 0.0
          %919 = vmatprep.subr.mxu0 0.0
          %920 = vmatpush2.msra.mxu0 0.0
          %921 = vmatprep.subr.mxu0 0.0
          %922 = vmatpush2.msra.mxu0 0.0
          %923 = vmatprep.subr.mxu0 0.0
          %924 = vmatpush2.msra.mxu0 0.0
          %925 = vmatprep.subr.mxu0 0.0
          %926 = vmatpush2.msra.mxu0 0.0
          %927 = vmatprep.subr.mxu0 0.0
          %928 = vmatpush2.msra.mxu0 0.0
          %929 = vmatprep.subr.mxu0 0.0
          %930 = vmatpush2.msra.mxu0 0.0
          %931 = vmatprep.subr.mxu0 0.0
          %932 = vmatpush2.msra.mxu0 0.0
          %933 = vmatprep.mubr.f32.mxu0 0.0
          %934 = vmatmul.mubr.f32.gmra.mxu0 %v867
          %v935 = vpop.f32.mrf.mxu0
          %v936 = vadd.f32 %v849, %v935
          %v937 = vpop.f32.mrf.mxu0
          %938 = vdwg.mxu0
          %v939 = vld [vmem:[%s7] sm:$0xff]
          %v940 = vld [vmem:[%s7 + $0x8] sm:$0xff]
          %v941 = vld [vmem:[%s7 + $0x10] sm:$0xff]
          %v942 = vld [vmem:[%s7 + $0x18] sm:$0xff]
          %v943 = vld [vmem:[%s8] sm:$0xff]
          %v944 = vld [vmem:[%s8 + $0x8] sm:$0xff]
          %v945 = vld [vmem:[%s8 + $0x10] sm:$0xff]
          %v946 = vld [vmem:[%s8 + $0x18] sm:$0xff]
          %vm947 = vcmask 64512
          %v949 = vsel %vm947, %v943, 0
          %v952 = vsel %vm947, %v944, 0
          %v955 = vsel %vm947, %v945, 0
          %v958 = vsel %vm947, %v946, 0
          %960 = vmatprep.subr.mxu0 0.0
          %961 = vmatpush1.msra.mxu0 0.0
          %962 = vmatprep.subr.mxu0 0.0
          %963 = vmatpush1.msra.mxu0 0.0
          %964 = vmatprep.subr.mxu0 0.0
          %965 = vmatpush1.msra.mxu0 0.0
          %966 = vmatprep.subr.mxu0 0.0
          %967 = vmatpush1.msra.mxu0 0.0
          %968 = vmatprep.subr.mxu0 0.0
          %969 = vmatpush1.msra.mxu0 0.0
          %970 = vmatprep.subr.mxu0 0.0
          %971 = vmatpush1.msra.mxu0 0.0
          %972 = vmatprep.subr.mxu0 0.0
          %973 = vmatpush1.msra.mxu0 0.0
          %974 = vmatprep.subr.mxu0 0.0
          %975 = vmatpush1.msra.mxu0 0.0
          %976 = vmatprep.subr.mxu0 0.0
          %977 = vmatpush1.msra.mxu0 0.0
          %978 = vmatprep.subr.mxu0 0.0
          %979 = vmatpush1.msra.mxu0 0.0
          %980 = vmatprep.subr.mxu0 0.0
          %981 = vmatpush1.msra.mxu0 0.0
          %982 = vmatprep.subr.mxu0 0.0
          %983 = vmatpush1.msra.mxu0 0.0
          %984 = vmatprep.subr.mxu0 0.0
          %985 = vmatpush1.msra.mxu0 0.0
          %986 = vmatprep.subr.mxu0 0.0
          %987 = vmatpush1.msra.mxu0 0.0
          %988 = vmatprep.subr.mxu0 0.0
          %989 = vmatpush1.msra.mxu0 0.0
          %990 = vmatprep.subr.mxu0 0.0
          %991 = vmatpush1.msra.mxu0 %v936
          %992 = vmatprep.subr.mxu0 0.0
          %993 = vmatpush2.msra.mxu0 0.0
          %994 = vmatprep.subr.mxu0 0.0
          %995 = vmatpush2.msra.mxu0 0.0
          %996 = vmatprep.subr.mxu0 0.0
          %997 = vmatpush2.msra.mxu0 0.0
          %998 = vmatprep.subr.mxu0 0.0
          %999 = vmatpush2.msra.mxu0 0.0
          %1000 = vmatprep.subr.mxu0 0.0
          %1001 = vmatpush2.msra.mxu0 0.0
          %1002 = vmatprep.subr.mxu0 0.0
          %1003 = vmatpush2.msra.mxu0 0.0
          %1004 = vmatprep.subr.mxu0 0.0
          %1005 = vmatpush2.msra.mxu0 0.0
          %1006 = vmatprep.subr.mxu0 0.0
          %1007 = vmatpush2.msra.mxu0 0.0
          %1008 = vmatprep.subr.mxu0 0.0
          %1009 = vmatpush2.msra.mxu0 0.0
          %1010 = vmatprep.subr.mxu0 0.0
          %1011 = vmatpush2.msra.mxu0 0.0
          %1012 = vmatprep.subr.mxu0 0.0
          %1013 = vmatpush2.msra.mxu0 0.0
          %1014 = vmatprep.subr.mxu0 0.0
          %1015 = vmatpush2.msra.mxu0 0.0
          %1016 = vmatprep.subr.mxu0 0.0
          %1017 = vmatpush2.msra.mxu0 0.0
          %1018 = vmatprep.subr.mxu0 0.0
          %1019 = vmatpush2.msra.mxu0 0.0
          %1020 = vmatprep.subr.mxu0 0.0
          %1021 = vmatpush2.msra.mxu0 0.0
          %1022 = vmatprep.subr.mxu0 0.0
          %1023 = vmatpush2.msra.mxu0 0.0
          %1024 = vmatprep.mubr.f32.mxu0 0.0
          %1025 = vmatmul.mubr.f32.gmra.mxu0 %v949
          %v1026 = vpop.f32.mrf.mxu0
          %v1027 = vadd.f32 0.0, %v1026
          %v1028 = vpop.f32.mrf.mxu0
          %1029 = vmatprep.mubr.f32.mxu0 0.0
          %1030 = vmatmul.mubr.f32.gmra.mxu0 %v952
          %v1031 = vpop.f32.mrf.mxu0
          %v1032 = vadd.f32 0.0, %v1031
          %v1033 = vpop.f32.mrf.mxu0
          %1034 = vmatprep.mubr.f32.mxu0 0.0
          %1035 = vmatmul.mubr.f32.gmra.mxu0 %v955
          %v1036 = vpop.f32.mrf.mxu0
          %v1037 = vadd.f32 0.0, %v1036
          %v1038 = vpop.f32.mrf.mxu0
          %1039 = vmatprep.mubr.f32.mxu0 0.0
          %1040 = vmatmul.mubr.f32.gmra.mxu0 %v958
          %v1041 = vpop.f32.mrf.mxu0
          %v1042 = vadd.f32 0.0, %v1041
          %v1043 = vpop.f32.mrf.mxu0
          %1044 = vdwg.mxu0
          %v1046 = vsel %vm947, %v939, 0
          %v1049 = vsel %vm947, %v940, 0
          %v1052 = vsel %vm947, %v941, 0
          %v1055 = vsel %vm947, %v942, 0
          %1057 = vmatprep.subr.mxu0 0.0
          %1058 = vmatpush1.msra.mxu0 0.0
          %1059 = vmatprep.subr.mxu0 0.0
          %1060 = vmatpush1.msra.mxu0 0.0
          %1061 = vmatprep.subr.mxu0 0.0
          %1062 = vmatpush1.msra.mxu0 0.0
          %1063 = vmatprep.subr.mxu0 0.0
          %1064 = vmatpush1.msra.mxu0 0.0
          %1065 = vmatprep.subr.mxu0 0.0
          %1066 = vmatpush1.msra.mxu0 0.0
          %1067 = vmatprep.subr.mxu0 0.0
          %1068 = vmatpush1.msra.mxu0 0.0
          %1069 = vmatprep.subr.mxu0 0.0
          %1070 = vmatpush1.msra.mxu0 0.0
          %1071 = vmatprep.subr.mxu0 0.0
          %1072 = vmatpush1.msra.mxu0 0.0
          %1073 = vmatprep.subr.mxu0 0.0
          %1074 = vmatpush1.msra.mxu0 0.0
          %1075 = vmatprep.subr.mxu0 0.0
          %1076 = vmatpush1.msra.mxu0 0.0
          %1077 = vmatprep.subr.mxu0 0.0
          %1078 = vmatpush1.msra.mxu0 0.0
          %1079 = vmatprep.subr.mxu0 0.0
          %1080 = vmatpush1.msra.mxu0 0.0
          %1081 = vmatprep.subr.mxu0 0.0
          %1082 = vmatpush1.msra.mxu0 0.0
          %1083 = vmatprep.subr.mxu0 0.0
          %1084 = vmatpush1.msra.mxu0 0.0
          %1085 = vmatprep.subr.mxu0 0.0
          %1086 = vmatpush1.msra.mxu0 0.0
          %1087 = vmatprep.subr.mxu0 0.0
          %1088 = vmatpush1.msra.mxu0 %v845
          %1089 = vmatprep.subr.mxu0 0.0
          %1090 = vmatpush2.msra.mxu0 0.0
          %1091 = vmatprep.subr.mxu0 0.0
          %1092 = vmatpush2.msra.mxu0 0.0
          %1093 = vmatprep.subr.mxu0 0.0
          %1094 = vmatpush2.msra.mxu0 0.0
          %1095 = vmatprep.subr.mxu0 0.0
          %1096 = vmatpush2.msra.mxu0 0.0
          %1097 = vmatprep.subr.mxu0 0.0
          %1098 = vmatpush2.msra.mxu0 0.0
          %1099 = vmatprep.subr.mxu0 0.0
          %1100 = vmatpush2.msra.mxu0 0.0
          %1101 = vmatprep.subr.mxu0 0.0
          %1102 = vmatpush2.msra.mxu0 0.0
          %1103 = vmatprep.subr.mxu0 0.0
          %1104 = vmatpush2.msra.mxu0 0.0
          %1105 = vmatprep.subr.mxu0 0.0
          %1106 = vmatpush2.msra.mxu0 0.0
          %1107 = vmatprep.subr.mxu0 0.0
          %1108 = vmatpush2.msra.mxu0 0.0
          %1109 = vmatprep.subr.mxu0 0.0
          %1110 = vmatpush2.msra.mxu0 0.0
          %1111 = vmatprep.subr.mxu0 0.0
          %1112 = vmatpush2.msra.mxu0 0.0
          %1113 = vmatprep.subr.mxu0 0.0
          %1114 = vmatpush2.msra.mxu0 0.0
          %1115 = vmatprep.subr.mxu0 0.0
          %1116 = vmatpush2.msra.mxu0 0.0
          %1117 = vmatprep.subr.mxu0 0.0
          %1118 = vmatpush2.msra.mxu0 0.0
          %1119 = vmatprep.subr.mxu0 0.0
          %1120 = vmatpush2.msra.mxu0 0.0
          %1121 = vmatprep.mubr.f32.mxu0 0.0
          %1122 = vmatmul.mubr.f32.gmra.mxu0 %v1046
          %v1123 = vpop.f32.mrf.mxu0
          %v1124 = vadd.f32 %v1027, %v1123
          %v1125 = vpop.f32.mrf.mxu0
          %1126 = vmatprep.mubr.f32.mxu0 0.0
          %1127 = vmatmul.mubr.f32.gmra.mxu0 %v1049
          %v1128 = vpop.f32.mrf.mxu0
          %v1129 = vadd.f32 %v1032, %v1128
          %v1130 = vpop.f32.mrf.mxu0
          %1131 = vmatprep.mubr.f32.mxu0 0.0
          %1132 = vmatmul.mubr.f32.gmra.mxu0 %v1052
          %v1133 = vpop.f32.mrf.mxu0
          %v1134 = vadd.f32 %v1037, %v1133
          %v1135 = vpop.f32.mrf.mxu0
          %1136 = vmatprep.mubr.f32.mxu0 0.0
          %1137 = vmatmul.mubr.f32.gmra.mxu0 %v1055
          %v1138 = vpop.f32.mrf.mxu0
          %v1139 = vadd.f32 %v1042, %v1138
          %v1140 = vpop.f32.mrf.mxu0
          %1141 = vdwg.mxu0
          %v1142 = vxor.u32 %v1124, 2147483648
          %v1143 = vxor.u32 %v1129, 2147483648
          %v1144 = vxor.u32 %v1134, 2147483648
          %v1145 = vxor.u32 %v1139, 2147483648
          %v1146 = vmul.f32 %v1142, 1.442695
          %v1147 = vpow.pop %v1146
          %v1148 = vmul.f32 %v1143, 1.442695
          %v1149 = vpow.pop %v1148
          %v1150 = vmul.f32 %v1144, 1.442695
          %v1151 = vpow.pop %v1150
          %v1152 = vmul.f32 %v1145, 1.442695
          %v1153 = vpow.pop %v1152
          %v1154 = vadd.f32 %v1147, 1.0
          %v1155 = vadd.f32 %v1149, 1.0
          %v1156 = vadd.f32 %v1151, 1.0
          %v1157 = vadd.f32 %v1153, 1.0
          %v1158 = vrcp.pop %v1154
          %v1159 = vmul.f32 1.0, %v1158
          %v1160 = vrcp.pop %v1155
          %v1161 = vmul.f32 1.0, %v1160
          %v1162 = vrcp.pop %v1156
          %v1163 = vmul.f32 1.0, %v1162
          %v1164 = vrcp.pop %v1157
          %v1165 = vmul.f32 1.0, %v1164
          %1166 = vst.msk [vmem:[%s496] sm:$0xff] %vm530, %v1159
          %1167 = vst.msk [vmem:[%s496 + $0x8] sm:$0xff] %vm530, %v1161
          %1168 = vst.msk [vmem:[%s496 + $0x10] sm:$0xff] %vm530, %v1163
          %1169 = vst.msk [vmem:[%s496 + $0x18] sm:$0xff] %vm530, %v1165
        $region110: #{tpu_custom_call.1} parent=89 // pred_fallthru
          _
        %p1170 = scmp.lt.s32.totalorder %s28, 1
        %s1171 = scalar_select %p1170, %s28, 1
        %s1172 = smul.addr %s1171, 4
        %s1173 = smul.addr %s1172, 8
        %s1174 = scalar_lea.vmem %s9, %s1173
        // Predicated region
        $region111: #{tpu_custom_call.1} parent=89 // pred_check
          %p1175 = pneg %p270
        $region112: #{tpu_custom_call.1} parent=89 // pred_check_branch
          %1177 = sbr.rel (%p1175) target = $region114
        $region113: #{tpu_custom_call.1} parent=89 // pred_region
          _
        $region114: #{tpu_custom_call.1} parent=89 // pred_fallthru
          _
      $region90: #{tpu_custom_call.1} parent=5 // pred_fallthru
        _
      %p1178 = scmp.le.s32.totalorder 2, %s19
      // Predicated region
      $region115: #{tpu_custom_call.1} parent=5 // pred_check
        %p1179 = pneg %p1178
      $region116: #{tpu_custom_call.1} parent=5 // pred_check_branch
        %1181 = sbr.rel (%p1179) target = $region118
      $region117: #{tpu_custom_call.1} parent=5 // pred_region
        %s1182 = ssub.s32 %s19, 2
        // Predicated region
        $region119: #{tpu_custom_call.1} parent=117 // pred_check
          %p1183 = pneg %p276
        $region120: #{tpu_custom_call.1} parent=117 // pred_check_branch
          %1185 = sbr.rel (%p1183) target = $region122
        $region121: #{tpu_custom_call.1} parent=117 // pred_region
          %p1186 = scmp.lt.s32.totalorder %s30, 1
          %s1187 = scalar_select %p1186, %s30, 1
          %s1188 = smul.addr %s1187, 4
          %s1189 = smul.addr %s1188, 8
          %s1190 = scalar_lea.vmem %s9, %s1189
        $region122: #{tpu_custom_call.1} parent=117 // pred_fallthru
          _
      $region118: #{tpu_custom_call.1} parent=5 // pred_fallthru
        _
    $region6: #{tpu_custom_call.1} parent=1 // loop_footer
      %s23 = sadd.s32 1, %s19
    $region7: #{tpu_custom_call.1} parent=1 // loop_footer_branch
      %18 = sbr.rel target = $region3
    $region8: #{tpu_custom_call.1} parent=1 // loop_exit
      _
    %1191 = vsyncpa [#allocation6], 1
    %s1192 = scalar_lea.sflag [#allocation6], 1
    %1193 = vsyncpa %s1192, 1
    %1194 = vsyncpa [#allocation8], 1

</llo_original>
